<compile_context>
chip_gen: v6e
topology: v6e:2x2x1
jax: 0.10.0
libtpu: 0.0.40
codegen_flags: <defaults>
</compile_context>

<pallas_src>
import functools
import math

import jax
import jax.numpy as jnp
from jax.experimental import pallas as pl
from jax.experimental.pallas import tpu as pltpu


def _round_up(x, m):
    return (x + m - 1) // m * m


def _nbytes(shape, dtype):
    return math.prod(shape) * jnp.dtype(dtype).itemsize


# ============================================================================
# In-kernel helpers
# ============================================================================
def _partial_stats(y):
    """Per-tile BN partials: row 0 = column sums, row 1 = centered sum-of-squares.

    Centered-per-tile stats + Chan cross-tile combine (done in XLA) replace the old
    one-pass E[y^2] - mean^2 formulation (catastrophic-cancellation concern)."""
    inv_m = 1.0 / float(y.shape[0])
    s = jnp.sum(y, axis=0, keepdims=True)
    d = y - s * inv_m
    m2 = jnp.sum(d * d, axis=0, keepdims=True)
    return jnp.concatenate([s, m2], axis=0)                    # (2, Cp) f32


def _conv3x3(a, w_row_ref, apad_ref, ho, wo):
    """3x3 / stride-1 / pad-1 conv on ONE image as an implicit GEMM.

    a:         (ho*wo, cin_p) bf16 activation, rows ordered (h, w) w-fastest.
    w_row_ref: (3, 3*cin_p, cout_p) bf16 -- per-kh weights, K blocks ordered kw=0,1,2.
    apad_ref:  VMEM scratch (ho*wo + 2*wo, 3*cin_p) bf16 -- vertical-halo-padded,
               kw-extended activation written once (explicit scratch, no concatenate
               temporaries; taps become clean slices + matmuls, no per-tap select).
    """
    mi = ho * wo
    cin_p = a.shape[1]
    zero = jnp.zeros((), a.dtype)

    # Horizontal (w +/- 1) neighbours with edge masking: the only 2 masked bf16 copies
    # left in the whole tap path.
    w_idx = jax.lax.broadcasted_iota(jnp.int32, (mi, 1), 0) % wo
    zrow = jnp.zeros((1, cin_p), a.dtype)
    a_h = jnp.concatenate([zrow, a, zrow], axis=0)             # (mi + 2, cin_p)
    left = jnp.where(w_idx > 0, a_h[0:mi, :], zero)            # in[h, w-1]
    right = jnp.where(w_idx < wo - 1, a_h[2:mi + 2, :], zero)  # in[h, w+1]

    # Halo-padded, kw-extended activation slab, written once.
    zhalo = jnp.zeros((wo, 3 * cin_p), a.dtype)
    apad_ref[0:wo, :] = zhalo
    apad_ref[wo + mi:, :] = zhalo
    apad_ref[wo:wo + mi, 0:cin_p] = left
    apad_ref[wo:wo + mi, cin_p:2 * cin_p] = a
    apad_ref[wo:wo + mi, 2 * cin_p:] = right

    # 3 matmuls with K = 3*cin_p (kw taps fused along K -> better occupancy of the
    # 256x256 v6e/v7x MXU); 3 accumulator adds kept adjacent to the dots (v7x MRB).
    acc = None
    for kh in range(3):                                        # dh = kh - 1
        lhs = apad_ref[kh * wo:kh * wo + mi, :]                # vertical tap: clean slice
        part = jnp.dot(lhs, w_row_ref[kh], preferred_element_type=jnp.float32)
        acc = part if acc is None else acc + part
    return acc                                                 # (mi, cout_p) f32


# ============================================================================
# Kernels (one image per grid step)
# ============================================================================
def _stage1_stride1_kernel(x_ref, w1_ref, *rest, ho, wo, has_projection):
    """conv1 (3x3 implicit GEMM) [+ 1x1 projection conv] + per-tile BN partial stats."""
    if has_projection:
        ws_ref, y1_ref, st1_ref, ysc_ref, stsc_ref, apad = rest
    else:
        y1_ref, st1_ref, apad = rest
    x = x_ref[0]                                               # (mi, cin_p) bf16
    y1 = _conv3x3(x, w1_ref, apad, ho, wo)                     # (mi, cp) f32
    st1_ref[0] = _partial_stats(y1)
    y1_ref[0] = y1.astype(y1_ref.dtype)
    if has_projection:
        ysc = jnp.dot(x, ws_ref[...], preferred_element_type=jnp.float32)
        stsc_ref[0] = _partial_stats(ysc)
        ysc_ref[0] = ysc.astype(ysc_ref.dtype)


def _stage1_strided_kernel(p1_ref, w1_ref, xs_ref, ws_ref,
                           y1_ref, st1_ref, ysc_ref, stsc_ref):
    """Strided conv1 (im2col GEMM) + strided 1x1 projection conv + BN partial stats."""
    y1 = jnp.dot(p1_ref[0], w1_ref[...], preferred_element_type=jnp.float32)
    st1_ref[0] = _partial_stats(y1)
    y1_ref[0] = y1.astype(y1_ref.dtype)
    ysc = jnp.dot(xs_ref[0], ws_ref[...], preferred_element_type=jnp.float32)
    stsc_ref[0] = _partial_stats(ysc)
    ysc_ref[0] = ysc.astype(ysc_ref.dtype)


def _stage2_kernel(y1_ref, s1_ref, b1_ref, w2_ref, y2_ref, st2_ref, apad, *, ho, wo):
    """BN1-apply + ReLU (single bf16 cast) + conv2 implicit GEMM + BN2 partial stats."""
    a1 = jnp.maximum(y1_ref[0].astype(jnp.float32) * s1_ref[...] + b1_ref[...], 0.0)
    a1 = a1.astype(jnp.bfloat16)                               # one cast for all 9 taps
    y2 = _conv3x3(a1, w2_ref, apad, ho, wo)
    st2_ref[0] = _partial_stats(y2)
    y2_ref[0] = y2.astype(y2_ref.dtype)


def _stage3_kernel(y2_ref, s2_ref, b2_ref, res_ref, sr_ref, br_ref, o_ref):
    """BN2-apply + shortcut per-channel affine + residual add + ReLU (lane-dense store)."""
    y = y2_ref[0].astype(jnp.float32) * s2_ref[...] + b2_ref[...]
    r = res_ref[0].astype(jnp.float32) * sr_ref[...] + br_ref[...]
    o_ref[0] = jnp.maximum(y + r, 0.0)


# ============================================================================
# XLA-side glue: im2col (strided conv only), RingConv2d weights, BN stat combine
# ============================================================================
def extract_patches(x_nhwc, ksize, stride, padding):
    """(N,H,W,C) -> (N, Ho*Wo, k*k*C) patches; K order = (kh, kw, cin)."""
    N, H, W, C = x_nhwc.shape
    xp = jnp.pad(x_nhwc, ((0, 0), (padding, padding), (padding, padding), (0, 0)))
    Ho = (H + 2 * padding - ksize) // stride + 1
    Wo = (W + 2 * padding - ksize) // stride + 1
    slices = []
    for kh in range(ksize):
        for kw in range(ksize):
            slices.append(xp[:, kh:kh + stride * Ho:stride, kw:kw + stride * Wo:stride, :])
    patches = jnp.stack(slices, axis=3)                        # (N, Ho, Wo, k*k, C)
    return patches.reshape(N, Ho * Wo, ksize * ksize * C), (Ho, Wo)


def make_ring(ring_size, ring_type):
    t = jnp.arange(ring_size, dtype=jnp.float32) / float(ring_size)
    if ring_type == "triangle":
        return 1.0 - 4.0 * jnp.abs(t - 0.5)
    return jnp.sin(2.0 * jnp.pi * t)


def ring_conv_weight(key, out_ch, in_ch, ksize, ring_size, ring_type):
    """RingConv2d effective weight (circular lerp on a fixed ring, kaiming scale),
    PyTorch layout (Cout, Cin, k, k)."""
    # TODO(synk): exact RingConv2d weight construction from ring_quantization/models.py
    # may differ (e.g. soft-assignment temperature); this uses circular lerp on the ring.
    ring = make_ring(ring_size, ring_type)
    pos = jax.random.uniform(key, (out_ch, in_ch, ksize, ksize),
                             minval=0.0, maxval=float(ring_size))
    i0 = jnp.floor(pos).astype(jnp.int32) % ring_size
    i1 = (i0 + 1) % ring_size
    frac = pos - jnp.floor(pos)
    w = (1.0 - frac) * ring[i0] + frac * ring[i1]
    return w * jnp.sqrt(2.0 / (in_ch * ksize * ksize))


def weight_to_matmul(w_pt):
    """(Cout,Cin,KH,KW) -> (KH*KW*Cin, Cout), matching extract_patches K order."""
    cout, cin, kh, kw = w_pt.shape
    return jnp.transpose(w_pt, (2, 3, 1, 0)).reshape(kh * kw * cin, cout)


def _fused_row_weights(w_pt, cin_p, cout_p):
    """(Cout,Cin,3,3) -> (3, 3*cin_p, cout_p) bf16; K blocks ordered kw=0,1,2."""
    cout, cin, _, _ = w_pt.shape
    w = jnp.transpose(w_pt, (2, 3, 1, 0))                      # (3, 3, Cin, Cout)
    w = jnp.pad(w, ((0, 0), (0, 0), (0, cin_p - cin), (0, cout_p - cout)))
    return w.reshape(3, 3 * cin_p, cout_p).astype(jnp.bfloat16)


def _bn_affine(stats, gamma_p, beta_p, m_tile, m_total, eps):
    """Chan-combine per-tile [sum, centered M2] -> per-channel BN scale/bias (biased var)."""
    s_t = stats[:, 0, :]
    m2_t = stats[:, 1, :]
    mean = jnp.sum(s_t, axis=0, keepdims=True) / m_total
    mu_t = s_t * (1.0 / m_tile)
    var = (jnp.sum(m2_t, axis=0, keepdims=True)
           + m_tile * jnp.sum((mu_t - mean) ** 2, axis=0, keepdims=True)) / m_total
    scale = gamma_p * jax.lax.rsqrt(var + eps)
    bias = beta_p - mean * scale
    return scale, bias


def _compiler_params(step_bytes):
    """Megacore-parallel image axis; VMEM limit derived from actual per-step block bytes
    (x2 double-buffer + headroom), capped below physical VMEM (64 MiB on v7x)."""
    limit = 2 * step_bytes + (8 << 20)
    cap = 48 << 20
    try:
        cap = int(pltpu.get_tpu_info().vmem_capacity_bytes) * 3 // 4
    except Exception:
        pass
    return pltpu.CompilerParams(
        dimension_semantics=("parallel",),
        vmem_limit_bytes=int(max(16 << 20, min(limit, cap))),
    )


# ============================================================================
# BasicBlock
# ============================================================================
class BasicBlockPallas:
    expansion = 1

    def __init__(self, in_channels, out_channels, stride=1, ring_size=8,
                 ring_type="triangle", *, key):
        k1, k2, k3 = jax.random.split(key, 3)
        self.in_channels = in_channels
        self.out_channels = out_channels
        self.stride = stride
        self.eps = 1e-5

        self.w1 = ring_conv_weight(k1, out_channels, in_channels, 3, ring_size, ring_type)
        self.w2 = ring_conv_weight(k2, out_channels, out_channels, 3, ring_size, ring_type)
        # BatchNorm params: PyTorch default init (gamma=1, beta=0), eps=1e-5
        self.g1 = jnp.ones((1, out_channels), jnp.float32)
        self.b1 = jnp.zeros((1, out_channels), jnp.float32)
        self.g2 = jnp.ones((1, out_channels), jnp.float32)
        self.b2 = jnp.zeros((1, out_channels), jnp.float32)

        self.has_projection = stride != 1 or in_channels != self.expansion * out_channels
        if self.has_projection:
            self.ws = ring_conv_weight(k3, self.expansion * out_channels, in_channels,
                                       1, ring_size, ring_type)
            self.gs = jnp.ones((1, self.expansion * out_channels), jnp.float32)
            self.bs = jnp.zeros((1, self.expansion * out_channels), jnp.float32)

        self._forward = jax.jit(self._forward_impl)

    def __call__(self, x_nchw):
        return self._forward(x_nchw)

    def _forward_impl(self, x_nchw):
        # TODO(synk): accept/return NHWC directly when chaining blocks to avoid the two
        # full-HBM layout-transpose passes per block.
        x = jnp.transpose(x_nchw, (0, 2, 3, 1)).astype(jnp.float32)   # NCHW -> NHWC
        N, H, W, Cin = x.shape
        Cout = self.out_channels
        s = self.stride
        Cp = _round_up(Cout, 128)
        Cin_p = _round_up(Cin, 128)
        Ho = H if s == 1 else (H + 2 - 3) // s + 1
        Wo = W if s == 1 else (W + 2 - 3) // s + 1
        Mi = Ho * Wo                       # rows per image (one image per grid step)
        m_total = float(N * Mi)

        img_spec = lambda rows, cols: pl.BlockSpec((1, rows, cols), lambda i: (i, 0, 0))
        full_spec = lambda shape: pl.BlockSpec(tuple(shape),
                                               lambda i, _n=len(shape): (0,) * _n)
        stat_spec = pl.BlockSpec((1, 2, Cp), lambda i: (i, 0, 0))
        stat_shape = jax.ShapeDtypeStruct((N, 2, Cp), jnp.float32)
        act_shape = jax.ShapeDtypeStruct((N, Mi, Cp), jnp.bfloat16)

        g1p = jnp.pad(self.g1, ((0, 0), (0, Cp - Cout)))
        b1p = jnp.pad(self.b1, ((0, 0), (0, Cp - Cout)))
        g2p = jnp.pad(self.g2, ((0, 0), (0, Cp - Cout)))
        b2p = jnp.pad(self.b2, ((0, 0), (0, Cp - Cout)))
        w2_row = _fused_row_weights(self.w2, Cp, Cp)

        # -------- stage 1: conv1 (+ projection conv) + BN partial stats --------
        xa = None
        if s == 1:
            # Implicit GEMM for conv1 too: no 9x im2col blow-up of the block input.
            xa = jnp.pad(x.reshape(N, Mi, Cin),
                         ((0, 0), (0, 0), (0, Cin_p - Cin))).astype(jnp.bfloat16)
            w1_row = _fused_row_weights(self.w1, Cin_p, Cp)
            ins = [xa, w1_row]
            in_specs = [img_spec(Mi, Cin_p), full_spec(w1_row.shape)]
            outs = [act_shape, stat_shape]
            out_specs = [img_spec(Mi, Cp), stat_spec]
            if self.has_projection:
                ws = jnp.pad(weight_to_matmul(self.ws),
                             ((0, Cin_p - Cin), (0, Cp - Cout))).astype(jnp.bfloat16)
                ins.append(ws)
                in_specs.append(full_spec(ws.shape))
                outs += [act_shape, stat_shape]
                out_specs += [img_spec(Mi, Cp), stat_spec]
            kern1 = functools.partial(_stage1_stride1_kernel, ho=Ho, wo=Wo,
                                      has_projection=self.has_projection)
            scratch1 = [pltpu.VMEM((Mi + 2 * Wo, 3 * Cin_p), jnp.bfloat16)]
            scratch1_bytes = _nbytes((Mi + 2 * Wo, 3 * Cin_p), jnp.bfloat16)
        else:
            # Downsampling conv keeps host-side im2col (stride-2 patches).
            p1, _ = extract_patches(x, 3, s, 1)                # (N, Mi, 9*Cin)
            K1 = p1.shape[-1]
            K1p = _round_up(K1, 128)
            p1 = jnp.pad(p1, ((0, 0), (0, 0), (0, K1p - K1))).astype(jnp.bfloat16)
            w1 = jnp.pad(weight_to_matmul(self.w1),
                         ((0, K1p - K1), (0, Cp - Cout))).astype(jnp.bfloat16)
            xs = jnp.pad(x[:, ::s, ::s, :].reshape(N, Mi, Cin),
                         ((0, 0), (0, 0), (0, Cin_p - Cin))).astype(jnp.bfloat16)
            ws = jnp.pad(weight_to_matmul(self.ws),
                         ((0, Cin_p - Cin), (0, Cp - Cout))).astype(jnp.bfloat16)
            ins = [p1, w1, xs, ws]
            in_specs = [img_spec(Mi, K1p), full_spec(w1.shape),
                        img_spec(Mi, Cin_p), full_spec(ws.shape)]
            outs = [act_shape, stat_shape, act_shape, stat_shape]
            out_specs = [img_spec(Mi, Cp), stat_spec, img_spec(Mi, Cp), stat_spec]
            kern1 = _stage1_strided_kernel
            scratch1 = []
            scratch1_bytes = 0

        step1_bytes = (sum(_nbytes(a.shape[1:], a.dtype)
                           if (len(a.shape) == 3 and a.shape[0] == N)
                           else _nbytes(a.shape, a.dtype) for a in ins)
                       + sum(_nbytes(o.shape[1:], o.dtype) for o in outs)
                       + scratch1_bytes)
        r1 = pl.pallas_call(
            kern1, grid=(N,), out_shape=tuple(outs),
            in_specs=in_specs, out_specs=tuple(out_specs), scratch_shapes=scratch1,
            compiler_params=_compiler_params(step1_bytes),
        )(*ins)
        if s == 1 and not self.has_projection:
            y1, st1 = r1
            ysc = stsc = None
        else:
            y1, st1, ysc, stsc = r1
        scale1, bias1 = _bn_affine(st1, g1p, b1p, Mi, m_total, self.eps)

        # -------- stage 2: BN1-apply + ReLU + conv2 implicit GEMM + BN2 partials --------
        ins2 = [y1, scale1, bias1, w2_row]
        in_specs2 = [img_spec(Mi, Cp), full_spec((1, Cp)), full_spec((1, Cp)),
                     full_spec(w2_row.shape)]
        outs2 = (act_shape, stat_shape)
        out_specs2 = (img_spec(Mi, Cp), stat_spec)
        scratch2 = [pltpu.VMEM((Mi + 2 * Wo, 3 * Cp), jnp.bfloat16)]
        step2_bytes = (2 * _nbytes((Mi, Cp), jnp.bfloat16)
                       + _nbytes((2, Cp), jnp.float32)
                       + 2 * _nbytes((1, Cp), jnp.float32)
                       + _nbytes(w2_row.shape, jnp.bfloat16)
                       + _nbytes((Mi + 2 * Wo, 3 * Cp), jnp.bfloat16))
        y2, st2 = pl.pallas_call(
            functools.partial(_stage2_kernel, ho=Ho, wo=Wo),
            grid=(N,), out_shape=outs2, in_specs=in_specs2, out_specs=out_specs2,
            scratch_shapes=scratch2,
            compiler_params=_compiler_params(step2_bytes),
        )(*ins2)
        scale2, bias2 = _bn_affine(st2, g2p, b2p, Mi, m_total, self.eps)

        # -------- stage 3: BN2-apply + shortcut affine + residual add + ReLU --------
        if self.has_projection:
            gsp = jnp.pad(self.gs, ((0, 0), (0, Cp - Cout)))
            bsp = jnp.pad(self.bs, ((0, 0), (0, Cp - Cout)))
            res = ysc
            scale_r, bias_r = _bn_affine(stsc, gsp, bsp, Mi, m_total, self.eps)
        else:
            # Identity shortcut (Cin == Cout): reuse the already channel-padded bf16
            # input rows as the residual (no extra f32 padded HBM copy).
            res = xa
            scale_r = jnp.ones((1, Cp), jnp.float32)
            bias_r = jnp.zeros((1, Cp), jnp.float32)

        ins3 = [y2, scale2, bias2, res, scale_r, bias_r]
        in_specs3 = [img_spec(Mi, Cp), full_spec((1, Cp)), full_spec((1, Cp)),
                     img_spec(Mi, Cp), full_spec((1, Cp)), full_spec((1, Cp))]
        out_shape3 = jax.ShapeDtypeStruct((N, Mi, Cp), jnp.float32)
        step3_bytes = (2 * _nbytes((Mi, Cp), jnp.bfloat16)
                       + _nbytes((Mi, Cp), jnp.float32)
                       + 4 * _nbytes((1, Cp), jnp.float32))
        out = pl.pallas_call(
            _stage3_kernel, grid=(N,), out_shape=out_shape3,
            in_specs=in_specs3, out_specs=img_spec(Mi, Cp),
            compiler_params=_compiler_params(step3_bytes),
        )(*ins3)

        out = out[:, :, :Cout].reshape(N, Ho, Wo, Cout)        # drop channel padding
        return jnp.transpose(out, (0, 3, 1, 2))                # NHWC -> NCHW


# TODO(synk): BatchNorm running_mean/running_var buffer updates (training side effects)
# are not emitted; they do not affect this forward output.


# ============================================================================
# Pure-JAX f32 reference for validation (same weights / same BN semantics)
# ============================================================================
def _reference_forward(block, x_nchw):
    def conv(x, w, stride, pad):
        return jax.lax.conv_general_dilated(
            x, w, (stride, stride), ((pad, pad), (pad, pad)),
            dimension_numbers=("NCHW", "OIHW", "NCHW"))

    def bn(y, gamma, beta, eps):
        mean = jnp.mean(y, axis=(0, 2, 3), keepdims=True)
        var = jnp.mean(jnp.square(y - mean), axis=(0, 2, 3), keepdims=True)
        g = gamma.reshape(1, -1, 1, 1)
        b = beta.reshape(1, -1, 1, 1)
        return (y - mean) * jax.lax.rsqrt(var + eps) * g + b

    x = x_nchw.astype(jnp.float32)
    out = jax.nn.relu(bn(conv(x, block.w1, block.stride, 1), block.g1, block.b1, block.eps))
    out = bn(conv(out, block.w2, 1, 1), block.g2, block.b2, block.eps)
    if block.has_projection:
        sc = bn(conv(x, block.ws, block.stride, 0), block.gs, block.bs, block.eps)
    else:
        sc = x
    return jax.nn.relu(out + sc)


if __name__ == "__main__":
    key = jax.random.PRNGKey(0)
    kx, kb1, kb2 = jax.random.split(key, 3)

    # Case 1: downsampling block with projection shortcut (stride=2, 4 -> 8 channels)
    x = jax.random.normal(kx, (2, 4, 8, 8), dtype=jnp.float32)          # NCHW
    block1 = BasicBlockPallas(4, 8, stride=2, ring_size=8, ring_type="triangle", key=kb1)
    y1 = jax.block_until_ready(block1(x))
    assert y1.shape == (2, 8, 4, 4), y1.shape

    # Case 2: identity-shortcut block (stride=1, same channels)
    block2 = BasicBlockPallas(8, 8, stride=1, ring_size=8, ring_type="triangle", key=kb2)
    y2 = jax.block_until_ready(block2(y1))
    assert y2.shape == (2, 8, 4, 4), y2.shape
    assert bool(jnp.all(jnp.isfinite(y1))) and bool(jnp.all(jnp.isfinite(y2)))
    assert float(jnp.min(y1)) >= 0.0 and float(jnp.min(y2)) >= 0.0       # ReLU outputs

    # Validate against a pure-JAX f32 reference (loose tol: bf16 MXU operands and
    # bf16 HBM intermediates in the Pallas path).
    r1 = _reference_forward(block1, x)
    r2 = _reference_forward(block2, y1)
    err1 = float(jnp.max(jnp.abs(y1 - r1)))
    err2 = float(jnp.max(jnp.abs(y2 - r2)))
    assert err1 < 0.15 and err2 < 0.15, (err1, err2)

    print("KERNEL_OK")
</pallas_src>

<mosaic_0001>
module attributes {stable_mosaic.version = 11 : i64} {
  func.func @_stage1_strided_kernel(%arg0: i32, %arg1: memref<1x16x128xbf16, #tpu.memory_space<vmem>>, %arg2: memref<128x128xbf16, #tpu.memory_space<vmem>>, %arg3: memref<1x16x128xbf16, #tpu.memory_space<vmem>>, %arg4: memref<128x128xbf16, #tpu.memory_space<vmem>>, %arg5: memref<1x16x128xbf16, #tpu.memory_space<vmem>>, %arg6: memref<1x2x128xf32, #tpu.memory_space<vmem>>, %arg7: memref<1x16x128xbf16, #tpu.memory_space<vmem>>, %arg8: memref<1x2x128xf32, #tpu.memory_space<vmem>>) attributes {dimension_semantics = [#tpu.dimension_semantics<parallel>], iteration_bounds = array<i64: 2>, scalar_prefetch = 0 : i64, scratch_operands = 0 : i64, tpu.core_type = #tpu.core_type<tc>, window_params = [{transform_indices = @transform_0, window_bounds = array<i64: 1, 16, 128>}, {pipeline_mode = #tpu.pipeline_mode<synchronous>, transform_indices = @transform_1, window_bounds = array<i64: 128, 128>}, {transform_indices = @transform_2, window_bounds = array<i64: 1, 16, 128>}, {pipeline_mode = #tpu.pipeline_mode<synchronous>, transform_indices = @transform_3, window_bounds = array<i64: 128, 128>}, {transform_indices = @transform_4, window_bounds = array<i64: 1, 16, 128>}, {transform_indices = @transform_5, window_bounds = array<i64: 1, 2, 128>}, {transform_indices = @transform_6, window_bounds = array<i64: 1, 16, 128>}, {transform_indices = @transform_7, window_bounds = array<i64: 1, 2, 128>}]} {
    %c0 = arith.constant 0 : index
    %c0_0 = arith.constant 0 : index
    %c0_1 = arith.constant 0 : index
    %0 = vector.load %arg1[%c0, %c0_0, %c0_1] : memref<1x16x128xbf16, #tpu.memory_space<vmem>>, vector<1x16x128xbf16>
    %1 = vector.shape_cast %0 : vector<1x16x128xbf16> to vector<16x128xbf16>
    %c0_2 = arith.constant 0 : index
    %c0_3 = arith.constant 0 : index
    %2 = vector.load %arg2[%c0_2, %c0_3] : memref<128x128xbf16, #tpu.memory_space<vmem>>, vector<128x128xbf16>
    %cst = arith.constant dense<0.000000e+00> : vector<16x128xf32>
    %3 = tpu.matmul %1, %2, %cst {dimension_numbers = #tpu.dot_dimension_numbers<[1], [0], [0], [1], [0, 0, 1, 1], [], []>} : vector<16x128xbf16>, vector<128x128xbf16>, vector<16x128xf32> -> vector<16x128xf32>
    %cst_4 = arith.constant dense<0.000000e+00> : vector<128xf32>
    %4 = vector.multi_reduction <add>, %3, %cst_4 [0] : vector<16x128xf32> to vector<128xf32>
    %5 = vector.shape_cast %4 : vector<128xf32> to vector<1x128xf32>
    %cst_5 = arith.constant 6.250000e-02 : f32
    %6 = vector.broadcast %cst_5 : f32 to vector<1x128xf32>
    %7 = arith.mulf %5, %6 : vector<1x128xf32>
    %8 = vector.broadcast %7 : vector<1x128xf32> to vector<16x128xf32>
    %9 = arith.subf %3, %8 : vector<16x128xf32>
    %10 = arith.mulf %9, %9 : vector<16x128xf32>
    %cst_6 = arith.constant dense<0.000000e+00> : vector<128xf32>
    %11 = vector.multi_reduction <add>, %10, %cst_6 [0] : vector<16x128xf32> to vector<128xf32>
    %12 = vector.shape_cast %11 : vector<128xf32> to vector<1x128xf32>
    %13 = tpu.concatenate %5, %12 in 0 : vector<1x128xf32>, vector<1x128xf32> -> vector<2x128xf32>
    %c0_7 = arith.constant 0 : index
    %c0_8 = arith.constant 0 : index
    %c0_9 = arith.constant 0 : index
    %14 = vector.load %arg6[%c0_7, %c0_8, %c0_9] : memref<1x2x128xf32, #tpu.memory_space<vmem>>, vector<1x2x128xf32>
    %15 = vector.shape_cast %14 : vector<1x2x128xf32> to vector<2x128xf32>
    %16 = vector.shape_cast %13 : vector<2x128xf32> to vector<1x2x128xf32>
    tpu.vector_store %arg6[%c0_7, %c0_8, %c0_9], %16 {strides = array<i32>} : memref<1x2x128xf32, #tpu.memory_space<vmem>>, vector<1x2x128xf32>,
    %17 = arith.truncf %3 : vector<16x128xf32> to vector<16x128xbf16>
    %c0_10 = arith.constant 0 : index
    %c0_11 = arith.constant 0 : index
    %c0_12 = arith.constant 0 : index
    %18 = vector.load %arg5[%c0_10, %c0_11, %c0_12] : memref<1x16x128xbf16, #tpu.memory_space<vmem>>, vector<1x16x128xbf16>
    %19 = vector.shape_cast %18 : vector<1x16x128xbf16> to vector<16x128xbf16>
    %20 = vector.shape_cast %17 : vector<16x128xbf16> to vector<1x16x128xbf16>
    tpu.vector_store %arg5[%c0_10, %c0_11, %c0_12], %20 {strides = array<i32>} : memref<1x16x128xbf16, #tpu.memory_space<vmem>>, vector<1x16x128xbf16>,
    %c0_13 = arith.constant 0 : index
    %c0_14 = arith.constant 0 : index
    %c0_15 = arith.constant 0 : index
    %21 = vector.load %arg3[%c0_13, %c0_14, %c0_15] : memref<1x16x128xbf16, #tpu.memory_space<vmem>>, vector<1x16x128xbf16>
    %22 = vector.shape_cast %21 : vector<1x16x128xbf16> to vector<16x128xbf16>
    %c0_16 = arith.constant 0 : index
    %c0_17 = arith.constant 0 : index
    %23 = vector.load %arg4[%c0_16, %c0_17] : memref<128x128xbf16, #tpu.memory_space<vmem>>, vector<128x128xbf16>
    %cst_18 = arith.constant dense<0.000000e+00> : vector<16x128xf32>
    %24 = tpu.matmul %22, %23, %cst_18 {dimension_numbers = #tpu.dot_dimension_numbers<[1], [0], [0], [1], [0, 0, 1, 1], [], []>} : vector<16x128xbf16>, vector<128x128xbf16>, vector<16x128xf32> -> vector<16x128xf32>
    %cst_19 = arith.constant dense<0.000000e+00> : vector<128xf32>
    %25 = vector.multi_reduction <add>, %24, %cst_19 [0] : vector<16x128xf32> to vector<128xf32>
    %26 = vector.shape_cast %25 : vector<128xf32> to vector<1x128xf32>
    %cst_20 = arith.constant 6.250000e-02 : f32
    %27 = vector.broadcast %cst_20 : f32 to vector<1x128xf32>
    %28 = arith.mulf %26, %27 : vector<1x128xf32>
    %29 = vector.broadcast %28 : vector<1x128xf32> to vector<16x128xf32>
    %30 = arith.subf %24, %29 : vector<16x128xf32>
    %31 = arith.mulf %30, %30 : vector<16x128xf32>
    %cst_21 = arith.constant dense<0.000000e+00> : vector<128xf32>
    %32 = vector.multi_reduction <add>, %31, %cst_21 [0] : vector<16x128xf32> to vector<128xf32>
    %33 = vector.shape_cast %32 : vector<128xf32> to vector<1x128xf32>
    %34 = tpu.concatenate %26, %33 in 0 : vector<1x128xf32>, vector<1x128xf32> -> vector<2x128xf32>
    %c0_22 = arith.constant 0 : index
    %c0_23 = arith.constant 0 : index
    %c0_24 = arith.constant 0 : index
    %35 = vector.load %arg8[%c0_22, %c0_23, %c0_24] : memref<1x2x128xf32, #tpu.memory_space<vmem>>, vector<1x2x128xf32>
    %36 = vector.shape_cast %35 : vector<1x2x128xf32> to vector<2x128xf32>
    %37 = vector.shape_cast %34 : vector<2x128xf32> to vector<1x2x128xf32>
    tpu.vector_store %arg8[%c0_22, %c0_23, %c0_24], %37 {strides = array<i32>} : memref<1x2x128xf32, #tpu.memory_space<vmem>>, vector<1x2x128xf32>,
    %38 = arith.truncf %24 : vector<16x128xf32> to vector<16x128xbf16>
    %c0_25 = arith.constant 0 : index
    %c0_26 = arith.constant 0 : index
    %c0_27 = arith.constant 0 : index
    %39 = vector.load %arg7[%c0_25, %c0_26, %c0_27] : memref<1x16x128xbf16, #tpu.memory_space<vmem>>, vector<1x16x128xbf16>
    %40 = vector.shape_cast %39 : vector<1x16x128xbf16> to vector<16x128xbf16>
    %41 = vector.shape_cast %38 : vector<16x128xbf16> to vector<1x16x128xbf16>
    tpu.vector_store %arg7[%c0_25, %c0_26, %c0_27], %41 {strides = array<i32>} : memref<1x16x128xbf16, #tpu.memory_space<vmem>>, vector<1x16x128xbf16>,
    return
  }
  func.func @transform_0(%arg0: i32) -> (i32, i32, i32) {
    %c0_i32 = arith.constant 0 : i32
    %c0_i32_0 = arith.constant 0 : i32
    %c0_i32_1 = arith.constant 0 : i32
    return %arg0, %c0_i32, %c0_i32_0 : i32, i32, i32
  }
  func.func @transform_1(%arg0: i32) -> (i32, i32) {
    %c0_i32 = arith.constant 0 : i32
    %c0_i32_0 = arith.constant 0 : i32
    %c0_i32_1 = arith.constant 0 : i32
    return %c0_i32, %c0_i32_0 : i32, i32
  }
  func.func @transform_2(%arg0: i32) -> (i32, i32, i32) {
    %c0_i32 = arith.constant 0 : i32
    %c0_i32_0 = arith.constant 0 : i32
    %c0_i32_1 = arith.constant 0 : i32
    return %arg0, %c0_i32, %c0_i32_0 : i32, i32, i32
  }
  func.func @transform_3(%arg0: i32) -> (i32, i32) {
    %c0_i32 = arith.constant 0 : i32
    %c0_i32_0 = arith.constant 0 : i32
    %c0_i32_1 = arith.constant 0 : i32
    return %c0_i32, %c0_i32_0 : i32, i32
  }
  func.func @transform_4(%arg0: i32) -> (i32, i32, i32) {
    %c0_i32 = arith.constant 0 : i32
    %c0_i32_0 = arith.constant 0 : i32
    %c0_i32_1 = arith.constant 0 : i32
    return %arg0, %c0_i32, %c0_i32_0 : i32, i32, i32
  }
  func.func @transform_5(%arg0: i32) -> (i32, i32, i32) {
    %c0_i32 = arith.constant 0 : i32
    %c0_i32_0 = arith.constant 0 : i32
    %c0_i32_1 = arith.constant 0 : i32
    return %arg0, %c0_i32, %c0_i32_0 : i32, i32, i32
  }
  func.func @transform_6(%arg0: i32) -> (i32, i32, i32) {
    %c0_i32 = arith.constant 0 : i32
    %c0_i32_0 = arith.constant 0 : i32
    %c0_i32_1 = arith.constant 0 : i32
    return %arg0, %c0_i32, %c0_i32_0 : i32, i32, i32
  }
  func.func @transform_7(%arg0: i32) -> (i32, i32, i32) {
    %c0_i32 = arith.constant 0 : i32
    %c0_i32_0 = arith.constant 0 : i32
    %c0_i32_1 = arith.constant 0 : i32
    return %arg0, %c0_i32, %c0_i32_0 : i32, i32, i32
  }
}

module attributes {stable_mosaic.version = 11 : i64} {
  func.func @_stage2_kernel(%arg0: i32, %arg1: memref<1x16x128xbf16, #tpu.memory_space<vmem>>, %arg2: memref<1x128xf32, #tpu.memory_space<vmem>>, %arg3: memref<1x128xf32, #tpu.memory_space<vmem>>, %arg4: memref<3x384x128xbf16, #tpu.memory_space<vmem>>, %arg5: memref<1x16x128xbf16, #tpu.memory_space<vmem>>, %arg6: memref<1x2x128xf32, #tpu.memory_space<vmem>>, %arg7: memref<24x384xbf16, #tpu.memory_space<vmem>>) attributes {dimension_semantics = [#tpu.dimension_semantics<parallel>], iteration_bounds = array<i64: 2>, scalar_prefetch = 0 : i64, scratch_operands = 1 : i64, tpu.core_type = #tpu.core_type<tc>, window_params = [{transform_indices = @transform_0, window_bounds = array<i64: 1, 16, 128>}, {pipeline_mode = #tpu.pipeline_mode<synchronous>, transform_indices = @transform_1, window_bounds = array<i64: 1, 128>}, {pipeline_mode = #tpu.pipeline_mode<synchronous>, transform_indices = @transform_2, window_bounds = array<i64: 1, 128>}, {pipeline_mode = #tpu.pipeline_mode<synchronous>, transform_indices = @transform_3, window_bounds = array<i64: 3, 384, 128>}, {transform_indices = @transform_4, window_bounds = array<i64: 1, 16, 128>}, {transform_indices = @transform_5, window_bounds = array<i64: 1, 2, 128>}]} {
    %c0 = arith.constant 0 : index
    %c0_0 = arith.constant 0 : index
    %c0_1 = arith.constant 0 : index
    %0 = vector.load %arg1[%c0, %c0_0, %c0_1] : memref<1x16x128xbf16, #tpu.memory_space<vmem>>, vector<1x16x128xbf16>
    %1 = vector.shape_cast %0 : vector<1x16x128xbf16> to vector<16x128xbf16>
    %2 = arith.extf %1 : vector<16x128xbf16> to vector<16x128xf32>
    %c0_2 = arith.constant 0 : index
    %c0_3 = arith.constant 0 : index
    %3 = vector.load %arg2[%c0_2, %c0_3] : memref<1x128xf32, #tpu.memory_space<vmem>>, vector<1x128xf32>
    %4 = vector.broadcast %3 : vector<1x128xf32> to vector<16x128xf32>
    %5 = arith.mulf %2, %4 : vector<16x128xf32>
    %c0_4 = arith.constant 0 : index
    %c0_5 = arith.constant 0 : index
    %6 = vector.load %arg3[%c0_4, %c0_5] : memref<1x128xf32, #tpu.memory_space<vmem>>, vector<1x128xf32>
    %7 = vector.broadcast %6 : vector<1x128xf32> to vector<16x128xf32>
    %8 = arith.addf %5, %7 : vector<16x128xf32>
    %cst = arith.constant 0.000000e+00 : f32
    %9 = vector.broadcast %cst : f32 to vector<16x128xf32>
    %10 = arith.maximumf %8, %9 : vector<16x128xf32>
    %11 = arith.truncf %10 : vector<16x128xf32> to vector<16x128xbf16>
    %12 = tpu.iota {dimensions = array<i32: 0>} : vector<16x1xi32>
    %c4_i32 = arith.constant 4 : i32
    %c0_i32 = arith.constant 0 : i32
    %13 = arith.cmpi eq, %c4_i32, %c0_i32 : i32
    %c1_i32 = arith.constant 1 : i32
    %14 = arith.select %13, %c1_i32, %c4_i32 : i32
    %15 = vector.broadcast %14 : i32 to vector<16x1xi32>
    %16 = arith.remsi %12, %15 : vector<16x1xi32>
    %c0_i32_6 = arith.constant 0 : i32
    %17 = vector.broadcast %c0_i32_6 : i32 to vector<16x1xi32>
    %18 = arith.cmpi ne, %16, %17 : vector<16x1xi32>
    %c0_i32_7 = arith.constant 0 : i32
    %19 = vector.broadcast %c0_i32_7 : i32 to vector<16x1xi32>
    %20 = arith.cmpi slt, %16, %19 : vector<16x1xi32>
    %c0_i32_8 = arith.constant 0 : i32
    %21 = arith.cmpi slt, %14, %c0_i32_8 : i32
    %22 = vector.broadcast %21 : i1 to vector<16x1xi1>
    %23 = vector.broadcast %22 : vector<16x1xi1> to vector<16x1xi1>
    %24 = arith.xori %20, %23 : vector<16x1xi1>
    %25 = arith.andi %24, %18 : vector<16x1xi1>
    %26 = vector.broadcast %14 : i32 to vector<16x1xi32>
    %27 = arith.addi %16, %26 : vector<16x1xi32>
    %28 = arith.select %25, %27, %16 : vector<16x1xi1>, vector<16x1xi32>
    %cst_9 = arith.constant 0.000000e+00 : bf16
    %29 = vector.broadcast %cst_9 : bf16 to vector<1x128xbf16>
    %30 = tpu.concatenate %29, %11, %29 in 0 : vector<1x128xbf16>, vector<16x128xbf16>, vector<1x128xbf16> -> vector<18x128xbf16>
    %c0_i32_10 = arith.constant 0 : i32
    %31 = vector.broadcast %c0_i32_10 : i32 to vector<16x1xi32>
    %32 = arith.cmpi sgt, %28, %31 : vector<16x1xi32>
    %33 = vector.extract_strided_slice %30 {offsets = [0, 0], sizes = [16, 128], strides = [1, 1]} : vector<18x128xbf16> to vector<16x128xbf16>
    %cst_11 = arith.constant 0.000000e+00 : bf16
    %34 = vector.shape_cast %32 : vector<16x1xi1> to vector<16x1xi1>
    %35 = vector.broadcast %34 : vector<16x1xi1> to vector<16x128xi1>
    %36 = vector.broadcast %cst_11 : bf16 to vector<16x128xbf16>
    %37 = arith.select %35, %33, %36 : vector<16x128xi1>, vector<16x128xbf16>
    %c3_i32 = arith.constant 3 : i32
    %38 = vector.broadcast %c3_i32 : i32 to vector<16x1xi32>
    %39 = arith.cmpi slt, %28, %38 : vector<16x1xi32>
    %40 = vector.extract_strided_slice %30 {offsets = [2, 0], sizes = [16, 128], strides = [1, 1]} : vector<18x128xbf16> to vector<16x128xbf16>
    %cst_12 = arith.constant 0.000000e+00 : bf16
    %41 = vector.shape_cast %39 : vector<16x1xi1> to vector<16x1xi1>
    %42 = vector.broadcast %41 : vector<16x1xi1> to vector<16x128xi1>
    %43 = vector.broadcast %cst_12 : bf16 to vector<16x128xbf16>
    %44 = arith.select %42, %40, %43 : vector<16x128xi1>, vector<16x128xbf16>
    %cst_13 = arith.constant 0.000000e+00 : bf16
    %45 = vector.broadcast %cst_13 : bf16 to vector<4x384xbf16>
    %c0_14 = arith.constant 0 : index
    %c0_15 = arith.constant 0 : index
    %46 = vector.load %arg7[%c0_14, %c0_15] : memref<24x384xbf16, #tpu.memory_space<vmem>>, vector<4x384xbf16>
    tpu.vector_store %arg7[%c0_14, %c0_15], %45 {strides = array<i32>} : memref<24x384xbf16, #tpu.memory_space<vmem>>, vector<4x384xbf16>,
    %c20 = arith.constant 20 : index
    %c0_16 = arith.constant 0 : index
    %47 = vector.load %arg7[%c20, %c0_16] : memref<24x384xbf16, #tpu.memory_space<vmem>>, vector<4x384xbf16>
    tpu.vector_store %arg7[%c20, %c0_16], %45 {strides = array<i32>} : memref<24x384xbf16, #tpu.memory_space<vmem>>, vector<4x384xbf16>,
    %c4 = arith.constant 4 : index
    %c0_17 = arith.constant 0 : index
    %48 = vector.load %arg7[%c4, %c0_17] : memref<24x384xbf16, #tpu.memory_space<vmem>>, vector<16x128xbf16>
    tpu.vector_store %arg7[%c4, %c0_17], %37 {strides = array<i32>} : memref<24x384xbf16, #tpu.memory_space<vmem>>, vector<16x128xbf16>,
    %c4_18 = arith.constant 4 : index
    %c128 = arith.constant 128 : index
    %49 = vector.load %arg7[%c4_18, %c128] : memref<24x384xbf16, #tpu.memory_space<vmem>>, vector<16x128xbf16>
    tpu.vector_store %arg7[%c4_18, %c128], %11 {strides = array<i32>} : memref<24x384xbf16, #tpu.memory_space<vmem>>, vector<16x128xbf16>,
    %c4_19 = arith.constant 4 : index
    %c256 = arith.constant 256 : index
    %50 = vector.load %arg7[%c4_19, %c256] : memref<24x384xbf16, #tpu.memory_space<vmem>>, vector<16x128xbf16>
    tpu.vector_store %arg7[%c4_19, %c256], %44 {strides = array<i32>} : memref<24x384xbf16, #tpu.memory_space<vmem>>, vector<16x128xbf16>,
    %c0_20 = arith.constant 0 : index
    %c0_21 = arith.constant 0 : index
    %51 = vector.load %arg7[%c0_20, %c0_21] : memref<24x384xbf16, #tpu.memory_space<vmem>>, vector<16x384xbf16>
    %c0_22 = arith.constant 0 : index
    %c0_23 = arith.constant 0 : index
    %c0_24 = arith.constant 0 : index
    %52 = vector.load %arg4[%c0_22, %c0_23, %c0_24] : memref<3x384x128xbf16, #tpu.memory_space<vmem>>, vector<1x384x128xbf16>
    %53 = vector.shape_cast %52 : vector<1x384x128xbf16> to vector<384x128xbf16>
    %cst_25 = arith.constant dense<0.000000e+00> : vector<16x128xf32>
    %54 = tpu.matmul %51, %53, %cst_25 {dimension_numbers = #tpu.dot_dimension_numbers<[1], [0], [0], [1], [0, 0, 1, 1], [], []>} : vector<16x384xbf16>, vector<384x128xbf16>, vector<16x128xf32> -> vector<16x128xf32>
    %c4_26 = arith.constant 4 : index
    %c0_27 = arith.constant 0 : index
    %55 = vector.load %arg7[%c4_26, %c0_27] : memref<24x384xbf16, #tpu.memory_space<vmem>>, vector<16x384xbf16>
    %c1 = arith.constant 1 : index
    %c0_28 = arith.constant 0 : index
    %c0_29 = arith.constant 0 : index
    %56 = vector.load %arg4[%c1, %c0_28, %c0_29] : memref<3x384x128xbf16, #tpu.memory_space<vmem>>, vector<1x384x128xbf16>
    %57 = vector.shape_cast %56 : vector<1x384x128xbf16> to vector<384x128xbf16>
    %cst_30 = arith.constant dense<0.000000e+00> : vector<16x128xf32>
    %58 = tpu.matmul %55, %57, %cst_30 {dimension_numbers = #tpu.dot_dimension_numbers<[1], [0], [0], [1], [0, 0, 1, 1], [], []>} : vector<16x384xbf16>, vector<384x128xbf16>, vector<16x128xf32> -> vector<16x128xf32>
    %59 = arith.addf %54, %58 : vector<16x128xf32>
    %c8 = arith.constant 8 : index
    %c0_31 = arith.constant 0 : index
    %60 = vector.load %arg7[%c8, %c0_31] : memref<24x384xbf16, #tpu.memory_space<vmem>>, vector<16x384xbf16>
    %c2 = arith.constant 2 : index
    %c0_32 = arith.constant 0 : index
    %c0_33 = arith.constant 0 : index
    %61 = vector.load %arg4[%c2, %c0_32, %c0_33] : memref<3x384x128xbf16, #tpu.memory_space<vmem>>, vector<1x384x128xbf16>
    %62 = vector.shape_cast %61 : vector<1x384x128xbf16> to vector<384x128xbf16>
    %cst_34 = arith.constant dense<0.000000e+00> : vector<16x128xf32>
    %63 = tpu.matmul %60, %62, %cst_34 {dimension_numbers = #tpu.dot_dimension_numbers<[1], [0], [0], [1], [0, 0, 1, 1], [], []>} : vector<16x384xbf16>, vector<384x128xbf16>, vector<16x128xf32> -> vector<16x128xf32>
    %64 = arith.addf %59, %63 : vector<16x128xf32>
    %cst_35 = arith.constant dense<0.000000e+00> : vector<128xf32>
    %65 = vector.multi_reduction <add>, %64, %cst_35 [0] : vector<16x128xf32> to vector<128xf32>
    %66 = vector.shape_cast %65 : vector<128xf32> to vector<1x128xf32>
    %cst_36 = arith.constant 6.250000e-02 : f32
    %67 = vector.broadcast %cst_36 : f32 to vector<1x128xf32>
    %68 = arith.mulf %66, %67 : vector<1x128xf32>
    %69 = vector.broadcast %68 : vector<1x128xf32> to vector<16x128xf32>
    %70 = arith.subf %64, %69 : vector<16x128xf32>
    %71 = arith.mulf %70, %70 : vector<16x128xf32>
    %cst_37 = arith.constant dense<0.000000e+00> : vector<128xf32>
    %72 = vector.multi_reduction <add>, %71, %cst_37 [0] : vector<16x128xf32> to vector<128xf32>
    %73 = vector.shape_cast %72 : vector<128xf32> to vector<1x128xf32>
    %74 = tpu.concatenate %66, %73 in 0 : vector<1x128xf32>, vector<1x128xf32> -> vector<2x128xf32>
    %c0_38 = arith.constant 0 : index
    %c0_39 = arith.constant 0 : index
    %c0_40 = arith.constant 0 : index
    %75 = vector.load %arg6[%c0_38, %c0_39, %c0_40] : memref<1x2x128xf32, #tpu.memory_space<vmem>>, vector<1x2x128xf32>
    %76 = vector.shape_cast %75 : vector<1x2x128xf32> to vector<2x128xf32>
    %77 = vector.shape_cast %74 : vector<2x128xf32> to vector<1x2x128xf32>
    tpu.vector_store %arg6[%c0_38, %c0_39, %c0_40], %77 {strides = array<i32>} : memref<1x2x128xf32, #tpu.memory_space<vmem>>, vector<1x2x128xf32>,
    %78 = arith.truncf %64 : vector<16x128xf32> to vector<16x128xbf16>
    %c0_41 = arith.constant 0 : index
    %c0_42 = arith.constant 0 : index
    %c0_43 = arith.constant 0 : index
    %79 = vector.load %arg5[%c0_41, %c0_42, %c0_43] : memref<1x16x128xbf16, #tpu.memory_space<vmem>>, vector<1x16x128xbf16>
    %80 = vector.shape_cast %79 : vector<1x16x128xbf16> to vector<16x128xbf16>
    %81 = vector.shape_cast %78 : vector<16x128xbf16> to vector<1x16x128xbf16>
    tpu.vector_store %arg5[%c0_41, %c0_42, %c0_43], %81 {strides = array<i32>} : memref<1x16x128xbf16, #tpu.memory_space<vmem>>, vector<1x16x128xbf16>,
    return
  }
  func.func @transform_0(%arg0: i32) -> (i32, i32, i32) {
    %c0_i32 = arith.constant 0 : i32
    %c0_i32_0 = arith.constant 0 : i32
    %c0_i32_1 = arith.constant 0 : i32
    return %arg0, %c0_i32, %c0_i32_0 : i32, i32, i32
  }
  func.func @transform_1(%arg0: i32) -> (i32, i32) {
    %c0_i32 = arith.constant 0 : i32
    %c0_i32_0 = arith.constant 0 : i32
    %c0_i32_1 = arith.constant 0 : i32
    return %c0_i32, %c0_i32_0 : i32, i32
  }
  func.func @transform_2(%arg0: i32) -> (i32, i32) {
    %c0_i32 = arith.constant 0 : i32
    %c0_i32_0 = arith.constant 0 : i32
    %c0_i32_1 = arith.constant 0 : i32
    return %c0_i32, %c0_i32_0 : i32, i32
  }
  func.func @transform_3(%arg0: i32) -> (i32, i32, i32) {
    %c0_i32 = arith.constant 0 : i32
    %c0_i32_0 = arith.constant 0 : i32
    %c0_i32_1 = arith.constant 0 : i32
    %c0_i32_2 = arith.constant 0 : i32
    return %c0_i32, %c0_i32_0, %c0_i32_1 : i32, i32, i32
  }
  func.func @transform_4(%arg0: i32) -> (i32, i32, i32) {
    %c0_i32 = arith.constant 0 : i32
    %c0_i32_0 = arith.constant 0 : i32
    %c0_i32_1 = arith.constant 0 : i32
    return %arg0, %c0_i32, %c0_i32_0 : i32, i32, i32
  }
  func.func @transform_5(%arg0: i32) -> (i32, i32, i32) {
    %c0_i32 = arith.constant 0 : i32
    %c0_i32_0 = arith.constant 0 : i32
    %c0_i32_1 = arith.constant 0 : i32
    return %arg0, %c0_i32, %c0_i32_0 : i32, i32, i32
  }
}

module attributes {stable_mosaic.version = 11 : i64} {
  func.func @_stage3_kernel(%arg0: i32, %arg1: memref<1x16x128xbf16, #tpu.memory_space<vmem>>, %arg2: memref<1x128xf32, #tpu.memory_space<vmem>>, %arg3: memref<1x128xf32, #tpu.memory_space<vmem>>, %arg4: memref<1x16x128xbf16, #tpu.memory_space<vmem>>, %arg5: memref<1x128xf32, #tpu.memory_space<vmem>>, %arg6: memref<1x128xf32, #tpu.memory_space<vmem>>, %arg7: memref<1x16x128xf32, #tpu.memory_space<vmem>>) attributes {dimension_semantics = [#tpu.dimension_semantics<parallel>], iteration_bounds = array<i64: 2>, scalar_prefetch = 0 : i64, scratch_operands = 0 : i64, tpu.core_type = #tpu.core_type<tc>, window_params = [{transform_indices = @transform_0, window_bounds = array<i64: 1, 16, 128>}, {pipeline_mode = #tpu.pipeline_mode<synchronous>, transform_indices = @transform_1, window_bounds = array<i64: 1, 128>}, {pipeline_mode = #tpu.pipeline_mode<synchronous>, transform_indices = @transform_2, window_bounds = array<i64: 1, 128>}, {transform_indices = @transform_3, window_bounds = array<i64: 1, 16, 128>}, {pipeline_mode = #tpu.pipeline_mode<synchronous>, transform_indices = @transform_4, window_bounds = array<i64: 1, 128>}, {pipeline_mode = #tpu.pipeline_mode<synchronous>, transform_indices = @transform_5, window_bounds = array<i64: 1, 128>}, {transform_indices = @transform_6, window_bounds = array<i64: 1, 16, 128>}]} {
    %c0 = arith.constant 0 : index
    %c0_0 = arith.constant 0 : index
    %c0_1 = arith.constant 0 : index
    %0 = vector.load %arg1[%c0, %c0_0, %c0_1] : memref<1x16x128xbf16, #tpu.memory_space<vmem>>, vector<1x16x128xbf16>
    %1 = vector.shape_cast %0 : vector<1x16x128xbf16> to vector<16x128xbf16>
    %2 = arith.extf %1 : vector<16x128xbf16> to vector<16x128xf32>
    %c0_2 = arith.constant 0 : index
    %c0_3 = arith.constant 0 : index
    %3 = vector.load %arg2[%c0_2, %c0_3] : memref<1x128xf32, #tpu.memory_space<vmem>>, vector<1x128xf32>
    %4 = vector.broadcast %3 : vector<1x128xf32> to vector<16x128xf32>
    %5 = arith.mulf %2, %4 : vector<16x128xf32>
    %c0_4 = arith.constant 0 : index
    %c0_5 = arith.constant 0 : index
    %6 = vector.load %arg3[%c0_4, %c0_5] : memref<1x128xf32, #tpu.memory_space<vmem>>, vector<1x128xf32>
    %7 = vector.broadcast %6 : vector<1x128xf32> to vector<16x128xf32>
    %8 = arith.addf %5, %7 : vector<16x128xf32>
    %c0_6 = arith.constant 0 : index
    %c0_7 = arith.constant 0 : index
    %c0_8 = arith.constant 0 : index
    %9 = vector.load %arg4[%c0_6, %c0_7, %c0_8] : memref<1x16x128xbf16, #tpu.memory_space<vmem>>, vector<1x16x128xbf16>
    %10 = vector.shape_cast %9 : vector<1x16x128xbf16> to vector<16x128xbf16>
    %11 = arith.extf %10 : vector<16x128xbf16> to vector<16x128xf32>
    %c0_9 = arith.constant 0 : index
    %c0_10 = arith.constant 0 : index
    %12 = vector.load %arg5[%c0_9, %c0_10] : memref<1x128xf32, #tpu.memory_space<vmem>>, vector<1x128xf32>
    %13 = vector.broadcast %12 : vector<1x128xf32> to vector<16x128xf32>
    %14 = arith.mulf %11, %13 : vector<16x128xf32>
    %c0_11 = arith.constant 0 : index
    %c0_12 = arith.constant 0 : index
    %15 = vector.load %arg6[%c0_11, %c0_12] : memref<1x128xf32, #tpu.memory_space<vmem>>, vector<1x128xf32>
    %16 = vector.broadcast %15 : vector<1x128xf32> to vector<16x128xf32>
    %17 = arith.addf %14, %16 : vector<16x128xf32>
    %18 = arith.addf %8, %17 : vector<16x128xf32>
    %cst = arith.constant 0.000000e+00 : f32
    %19 = vector.broadcast %cst : f32 to vector<16x128xf32>
    %20 = arith.maximumf %18, %19 : vector<16x128xf32>
    %c0_13 = arith.constant 0 : index
    %c0_14 = arith.constant 0 : index
    %c0_15 = arith.constant 0 : index
    %21 = vector.load %arg7[%c0_13, %c0_14, %c0_15] : memref<1x16x128xf32, #tpu.memory_space<vmem>>, vector<1x16x128xf32>
    %22 = vector.shape_cast %21 : vector<1x16x128xf32> to vector<16x128xf32>
    %23 = vector.shape_cast %20 : vector<16x128xf32> to vector<1x16x128xf32>
    tpu.vector_store %arg7[%c0_13, %c0_14, %c0_15], %23 {strides = array<i32>} : memref<1x16x128xf32, #tpu.memory_space<vmem>>, vector<1x16x128xf32>,
    return
  }
  func.func @transform_0(%arg0: i32) -> (i32, i32, i32) {
    %c0_i32 = arith.constant 0 : i32
    %c0_i32_0 = arith.constant 0 : i32
    %c0_i32_1 = arith.constant 0 : i32
    return %arg0, %c0_i32, %c0_i32_0 : i32, i32, i32
  }
  func.func @transform_1(%arg0: i32) -> (i32, i32) {
    %c0_i32 = arith.constant 0 : i32
    %c0_i32_0 = arith.constant 0 : i32
    %c0_i32_1 = arith.constant 0 : i32
    return %c0_i32, %c0_i32_0 : i32, i32
  }
  func.func @transform_2(%arg0: i32) -> (i32, i32) {
    %c0_i32 = arith.constant 0 : i32
    %c0_i32_0 = arith.constant 0 : i32
    %c0_i32_1 = arith.constant 0 : i32
    return %c0_i32, %c0_i32_0 : i32, i32
  }
  func.func @transform_3(%arg0: i32) -> (i32, i32, i32) {
    %c0_i32 = arith.constant 0 : i32
    %c0_i32_0 = arith.constant 0 : i32
    %c0_i32_1 = arith.constant 0 : i32
    return %arg0, %c0_i32, %c0_i32_0 : i32, i32, i32
  }
  func.func @transform_4(%arg0: i32) -> (i32, i32) {
    %c0_i32 = arith.constant 0 : i32
    %c0_i32_0 = arith.constant 0 : i32
    %c0_i32_1 = arith.constant 0 : i32
    return %c0_i32, %c0_i32_0 : i32, i32
  }
  func.func @transform_5(%arg0: i32) -> (i32, i32) {
    %c0_i32 = arith.constant 0 : i32
    %c0_i32_0 = arith.constant 0 : i32
    %c0_i32_1 = arith.constant 0 : i32
    return %c0_i32, %c0_i32_0 : i32, i32
  }
  func.func @transform_6(%arg0: i32) -> (i32, i32, i32) {
    %c0_i32 = arith.constant 0 : i32
    %c0_i32_0 = arith.constant 0 : i32
    %c0_i32_1 = arith.constant 0 : i32
    return %arg0, %c0_i32, %c0_i32_0 : i32, i32, i32
  }
}

</mosaic_0001>

<llo_original>
// kernel: _forward_impl.5
$region0: #{_forward_impl.5}
  #allocation0 [shape = 'u32[]', space=smem, size = 0x4, offset = 0x4, fixed_abs, tag = 'smem constant byte address 0x4 - core index']
  #allocation1 [shape = 'u32[144,128]{1,0:T(1,128)}', space=vmem, size = 0x12000, scoped, tag = 'internal scratch']
  %s0 = inlined_call_operand.vmem [shape: bf16[2,16,128], index: 0, kind: input, shape index: {}]
  %s1 = inlined_call_operand.vmem [shape: f32[1,128], index: 1, kind: input, shape index: {}]
  %s2 = inlined_call_operand.vmem [shape: f32[1,128], index: 2, kind: input, shape index: {}]
  %s3 = inlined_call_operand.vmem [shape: bf16[2,16,128], index: 3, kind: input, shape index: {}]
  %s4 = inlined_call_operand.vmem [shape: f32[1,128], index: 4, kind: input, shape index: {}]
  %s5 = inlined_call_operand.vmem [shape: f32[1,128], index: 5, kind: input, shape index: {}]
  %s6 = inlined_call_operand.hbm [shape: f32[2,16,128], index: 6, kind: output, shape index: {}]
  %s7 = sld [smem:[#allocation0]]
  $region57: #{_forward_impl.5} parent=0
    _
  %s9 = ssub.s32 1, %s7
  %s10 = scalar_select 0, %s9, %s7
  $region1: #{_forward_impl.5} parent=0
    #allocation2 [shape = 'u8[16384]{0}', space=vmem, size = 0x4000, scoped, tag = 'output window, operand 0']
    #allocation3 [shape = 's32[2]{0}', space=sflag, size = 0x8, scoped, tag = 'scoped memory for _forward_impl.5']
    %11 = vsyncpa [#allocation3], 0
    %s12 = scalar_lea.sflag [#allocation3], 1
    %13 = vsyncpa %s12, 0
    loop: start=0, step=1, limit=4
    $region2: #{_forward_impl.5} parent=1 // loop_pre_header
      _
    $region3: #{_forward_impl.5} parent=1 // loop_header
      %s15 = sphi 0, %s19
      %p16 = scmp.ge.s32.totalorder %s15, 4
      %s25 = sphi 0, %s27
      %s28 = sphi 0, %s25
      %s29 = sphi 0, %s28
      %s45 = sphi 0, %s29
      %s49 = sphi 0, %s49
      %s51 = sphi 0, %s49
      %s52 = sphi 0, %s51
      %s66 = sphi 0, %s52
      %s70 = sphi 0, %s70
      %s72 = sphi 0, %s70
      %s73 = sphi 0, %s72
      %s87 = sphi 0, %s73
      %s93 = sphi 0, %s95
      %s96 = sphi 0, %s93
      %s97 = sphi 0, %s96
      %s113 = sphi 0, %s97
      %s117 = sphi 0, %s117
      %s119 = sphi 0, %s117
      %s120 = sphi 0, %s119
      %s134 = sphi 0, %s120
      %s138 = sphi 0, %s138
      %s140 = sphi 0, %s138
      %s141 = sphi 0, %s140
      %s155 = sphi 0, %s141
      %s161 = sphi 0, %s163
      %s164 = sphi 0, %s161
      %s165 = sphi 0, %s164
      %s181 = sphi 0, %s165
    $region4: #{_forward_impl.5} parent=1 // loop_header_branch
      %18 = sbr.rel (%p16) target = $region8
    $region5: #{_forward_impl.5} parent=1 // loop_body
      %s20 = ssub.s32 %s15, 1
      %s21 = ssub.s32 %s15, 2
      %s22 = sadd.s32 %s15, 1
      %s23 = ssub.s32 %s15, %s22
      %p24 = scmp.eq.s32.totalorder %s23, 0
      %s26 = sadd.s32 %s25, 1
      %s27 = scalar_select %p24, %s25, %s26
      %p30 = pneg %p24
      %p31 = scmp.eq.s32.totalorder %s15, 1
      %p32 = por %p30, %p31
      %p33 = scmp.ne.s32.totalorder %s25, %s28
      %p34 = scmp.eq.s32.totalorder %s15, 0
      %p35 = por %p33, %p34
      %p36 = scmp.ne.s32.totalorder %s25, %s28
      %p37 = scmp.eq.s32.totalorder %s20, 1
      %p38 = por %p36, %p37
      %p39 = scmp.ne.s32.totalorder %s28, %s29
      %p40 = scmp.eq.s32.totalorder %s20, 0
      %p41 = por %p39, %p40
      %p42 = scmp.ne.s32.totalorder %s28, %s29
      %p43 = scmp.eq.s32.totalorder %s21, 1
      %p44 = por %p42, %p43
      %p46 = scmp.ne.s32.totalorder %s29, %s45
      %p47 = scmp.eq.s32.totalorder %s21, 0
      %p48 = por %p46, %p47
      %s50 = sadd.s32 %s49, 1
      %p53 = scmp.eq.s32.totalorder %s15, 1
      %p54 = scmp.ne.s32.totalorder %s49, %s51
      %p55 = scmp.eq.s32.totalorder %s15, 0
      %p56 = por %p54, %p55
      %p57 = scmp.ne.s32.totalorder %s49, %s51
      %p58 = scmp.eq.s32.totalorder %s20, 1
      %p59 = por %p57, %p58
      %p60 = scmp.ne.s32.totalorder %s51, %s52
      %p61 = scmp.eq.s32.totalorder %s20, 0
      %p62 = por %p60, %p61
      %p63 = scmp.ne.s32.totalorder %s51, %s52
      %p64 = scmp.eq.s32.totalorder %s21, 1
      %p65 = por %p63, %p64
      %p67 = scmp.ne.s32.totalorder %s52, %s66
      %p68 = scmp.eq.s32.totalorder %s21, 0
      %p69 = por %p67, %p68
      %s71 = sadd.s32 %s70, 1
      %p74 = scmp.eq.s32.totalorder %s15, 1
      %p75 = scmp.ne.s32.totalorder %s70, %s72
      %p76 = scmp.eq.s32.totalorder %s15, 0
      %p77 = por %p75, %p76
      %p78 = scmp.ne.s32.totalorder %s70, %s72
      %p79 = scmp.eq.s32.totalorder %s20, 1
      %p80 = por %p78, %p79
      %p81 = scmp.ne.s32.totalorder %s72, %s73
      %p82 = scmp.eq.s32.totalorder %s20, 0
      %p83 = por %p81, %p82
      %p84 = scmp.ne.s32.totalorder %s72, %s73
      %p85 = scmp.eq.s32.totalorder %s21, 1
      %p86 = por %p84, %p85
      %p88 = scmp.ne.s32.totalorder %s73, %s87
      %p89 = scmp.eq.s32.totalorder %s21, 0
      %p90 = por %p88, %p89
      %s91 = ssub.s32 %s15, %s22
      %p92 = scmp.eq.s32.totalorder %s91, 0
      %s94 = sadd.s32 %s93, 1
      %s95 = scalar_select %p92, %s93, %s94
      %p98 = pneg %p92
      %p99 = scmp.eq.s32.totalorder %s15, 1
      %p100 = por %p98, %p99
      %p101 = scmp.ne.s32.totalorder %s93, %s96
      %p102 = scmp.eq.s32.totalorder %s15, 0
      %p103 = por %p101, %p102
      %p104 = scmp.ne.s32.totalorder %s93, %s96
      %p105 = scmp.eq.s32.totalorder %s20, 1
      %p106 = por %p104, %p105
      %p107 = scmp.ne.s32.totalorder %s96, %s97
      %p108 = scmp.eq.s32.totalorder %s20, 0
      %p109 = por %p107, %p108
      %p110 = scmp.ne.s32.totalorder %s96, %s97
      %p111 = scmp.eq.s32.totalorder %s21, 1
      %p112 = por %p110, %p111
      %p114 = scmp.ne.s32.totalorder %s97, %s113
      %p115 = scmp.eq.s32.totalorder %s21, 0
      %p116 = por %p114, %p115
      %s118 = sadd.s32 %s117, 1
      %p121 = scmp.eq.s32.totalorder %s15, 1
      %p122 = scmp.ne.s32.totalorder %s117, %s119
      %p123 = scmp.eq.s32.totalorder %s15, 0
      %p124 = por %p122, %p123
      %p125 = scmp.ne.s32.totalorder %s117, %s119
      %p126 = scmp.eq.s32.totalorder %s20, 1
      %p127 = por %p125, %p126
      %p128 = scmp.ne.s32.totalorder %s119, %s120
      %p129 = scmp.eq.s32.totalorder %s20, 0
      %p130 = por %p128, %p129
      %p131 = scmp.ne.s32.totalorder %s119, %s120
      %p132 = scmp.eq.s32.totalorder %s21, 1
      %p133 = por %p131, %p132
      %p135 = scmp.ne.s32.totalorder %s120, %s134
      %p136 = scmp.eq.s32.totalorder %s21, 0
      %p137 = por %p135, %p136
      %s139 = sadd.s32 %s138, 1
      %p142 = scmp.eq.s32.totalorder %s15, 1
      %p143 = scmp.ne.s32.totalorder %s138, %s140
      %p144 = scmp.eq.s32.totalorder %s15, 0
      %p145 = por %p143, %p144
      %p146 = scmp.ne.s32.totalorder %s138, %s140
      %p147 = scmp.eq.s32.totalorder %s20, 1
      %p148 = por %p146, %p147
      %p149 = scmp.ne.s32.totalorder %s140, %s141
      %p150 = scmp.eq.s32.totalorder %s20, 0
      %p151 = por %p149, %p150
      %p152 = scmp.ne.s32.totalorder %s140, %s141
      %p153 = scmp.eq.s32.totalorder %s21, 1
      %p154 = por %p152, %p153
      %p156 = scmp.ne.s32.totalorder %s141, %s155
      %p157 = scmp.eq.s32.totalorder %s21, 0
      %p158 = por %p156, %p157
      %s159 = ssub.s32 %s15, %s22
      %p160 = scmp.eq.s32.totalorder %s159, 0
      %s162 = sadd.s32 %s161, 1
      %s163 = scalar_select %p160, %s161, %s162
      %p166 = pneg %p160
      %p167 = scmp.eq.s32.totalorder %s15, 1
      %p168 = por %p166, %p167
      %p169 = scmp.ne.s32.totalorder %s161, %s164
      %p170 = scmp.eq.s32.totalorder %s15, 0
      %p171 = por %p169, %p170
      %p172 = scmp.ne.s32.totalorder %s161, %s164
      %p173 = scmp.eq.s32.totalorder %s20, 1
      %p174 = por %p172, %p173
      %p175 = scmp.ne.s32.totalorder %s164, %s165
      %p176 = scmp.eq.s32.totalorder %s20, 0
      %p177 = por %p175, %p176
      %p178 = scmp.ne.s32.totalorder %s164, %s165
      %p179 = scmp.eq.s32.totalorder %s21, 1
      %p180 = por %p178, %p179
      %p182 = scmp.ne.s32.totalorder %s165, %s181
      %p183 = scmp.eq.s32.totalorder %s21, 0
      %p184 = por %p182, %p183
      %p185 = scmp.le.s32.totalorder 1, %s15
      %p186 = scmp.lt.s32.totalorder %s15, 3
      %p187 = pnand %p185, %p186
      %p188 = pneg %p187
      // Predicated region
      $region9: #{_forward_impl.5} parent=5 // pred_check
        _
      $region10: #{_forward_impl.5} parent=5 // pred_check_branch
        %190 = sbr.rel (%p187) target = $region12
      $region11: #{_forward_impl.5} parent=5 // pred_region
        %s191 = ssub.s32 %s15, 1
        // Predicated region
        $region13: #{_forward_impl.5} parent=11 // pred_check
          %p192 = pneg %p62
        $region14: #{_forward_impl.5} parent=11 // pred_check_branch
          %194 = sbr.rel (%p192) target = $region16
        $region15: #{_forward_impl.5} parent=11 // pred_region
          _
        $region16: #{_forward_impl.5} parent=11 // pred_fallthru
          _
        // Predicated region
        $region17: #{_forward_impl.5} parent=11 // pred_check
          %p195 = pneg %p83
        $region18: #{_forward_impl.5} parent=11 // pred_check_branch
          %197 = sbr.rel (%p195) target = $region20
        $region19: #{_forward_impl.5} parent=11 // pred_region
          _
        $region20: #{_forward_impl.5} parent=11 // pred_fallthru
          _
        // Predicated region
        $region21: #{_forward_impl.5} parent=11 // pred_check
          %p198 = pneg %p130
        $region22: #{_forward_impl.5} parent=11 // pred_check_branch
          %200 = sbr.rel (%p198) target = $region24
        $region23: #{_forward_impl.5} parent=11 // pred_region
          _
        $region24: #{_forward_impl.5} parent=11 // pred_fallthru
          _
        // Predicated region
        $region25: #{_forward_impl.5} parent=11 // pred_check
          %p201 = pneg %p151
        $region26: #{_forward_impl.5} parent=11 // pred_check_branch
          %203 = sbr.rel (%p201) target = $region28
        $region27: #{_forward_impl.5} parent=11 // pred_region
          _
        $region28: #{_forward_impl.5} parent=11 // pred_fallthru
          _
      $region12: #{_forward_impl.5} parent=5 // pred_fallthru
        _
      %p204 = scmp.lt.s32.totalorder %s15, 2
      // Predicated region
      $region29: #{_forward_impl.5} parent=5 // pred_check
        %p205 = pneg %p204
      $region30: #{_forward_impl.5} parent=5 // pred_check_branch
        %207 = sbr.rel (%p205) target = $region32
      $region31: #{_forward_impl.5} parent=5 // pred_region
        // Predicated region
        $region33: #{_forward_impl.5} parent=31 // pred_check
          %p208 = pneg %p35
        $region34: #{_forward_impl.5} parent=31 // pred_check_branch
          %210 = sbr.rel (%p208) target = $region36
        $region35: #{_forward_impl.5} parent=31 // pred_region
          %p211 = scmp.lt.s32.totalorder %s15, 1
          %s212 = scalar_select %p211, %s15, 1
          %s213 = smul.addr %s212, 2
          %s214 = smul.addr %s213, 4
          %s215 = scalar_lea.vmem %s0, %s214
        $region36: #{_forward_impl.5} parent=31 // pred_fallthru
          _
        // Predicated region
        $region37: #{_forward_impl.5} parent=31 // pred_check
          %p216 = pneg %p103
        $region38: #{_forward_impl.5} parent=31 // pred_check_branch
          %218 = sbr.rel (%p216) target = $region40
        $region39: #{_forward_impl.5} parent=31 // pred_region
          %p219 = scmp.lt.s32.totalorder %s15, 1
          %s220 = scalar_select %p219, %s15, 1
          %s221 = smul.addr %s220, 2
          %s222 = smul.addr %s221, 4
          %s223 = scalar_lea.vmem %s3, %s222
        $region40: #{_forward_impl.5} parent=31 // pred_fallthru
          _
      $region32: #{_forward_impl.5} parent=5 // pred_fallthru
        _
      %p224 = scmp.le.s32.totalorder 1, %s15
      %p225 = scmp.lt.s32.totalorder %s15, 3
      %p226 = pnand %p224, %p225
      %p227 = pneg %p226
      // Predicated region
      $region41: #{_forward_impl.5} parent=5 // pred_check
        _
      $region42: #{_forward_impl.5} parent=5 // pred_check_branch
        %229 = sbr.rel (%p226) target = $region44
      $region43: #{_forward_impl.5} parent=5 // pred_region
        %s230 = ssub.s32 %s15, 1
        %p231 = scmp.lt.s32.totalorder %s20, 1
        %s232 = scalar_select %p231, %s20, 1
        %s233 = smul.addr %s232, 2
        %s234 = smul.addr %s233, 4
        %s235 = scalar_lea.vmem %s0, %s234
        %p236 = pneg %p41
        %p237 = pneg %p38
        %p238 = pneg %p62
        %p239 = pneg %p59
        %p240 = pneg %p83
        %p241 = pneg %p80
        %p242 = scmp.lt.s32.totalorder %s20, 1
        %s243 = scalar_select %p242, %s20, 1
        %s244 = smul.addr %s243, 2
        %s245 = smul.addr %s244, 4
        %s246 = scalar_lea.vmem %s3, %s245
        %p247 = pneg %p109
        %p248 = pneg %p106
        %p249 = pneg %p130
        %p250 = pneg %p127
        %p251 = pneg %p151
        %p252 = pneg %p148
        %p253 = pneg %p177
        %p254 = pneg %p174
        %s255 = sand.u32 %s164, 1
        %s256 = scalar_lea.sflag [#allocation3], %s255
        %s257 = sand.u32 %s164, 1
        %s258 = smul.addr %s257, 16
        %s259 = scalar_lea.vmem [#allocation2], %s258
        %p260 = scmp.lt.s32.totalorder %s20, 1
        %s261 = scalar_select %p260, %s20, 1
        %s262 = smul.addr %s261, 2
        %s263 = smul.addr %s262, 4
        %s264 = scalar_lea.vmem %s0, %s263
        %p265 = scmp.lt.s32.totalorder %s20, 1
        %s266 = scalar_select %p265, %s20, 1
        %s267 = smul.addr %s266, 2
        %s268 = smul.addr %s267, 4
        %s269 = scalar_lea.vmem %s3, %s268
        %v270 = vld [vmem:[%s264] sm:$0xf]
        %v271 = vld [vmem:[%s264 + $0x4] sm:$0xf]
        %v272 = vunpack.c.l.bf16 %v270
        %v273 = vunpack.c.l.bf16 %v271
        %v274 = vld [vmem:[%s1] sm:$0x1]
        %v276 = vlaneseq
        %v277 = vshrl.u32 %v276, 7
        %v278 = vsub.s32 0, %v277
        %v279 = vrot.slane %v274, %v278
        %v281 = vmul.f32 %v272, %v279
        %v282 = vmul.f32 %v273, %v279
        %v283 = vld [vmem:[%s2] sm:$0x1]
        %v285 = vlaneseq
        %v286 = vshrl.u32 %v285, 7
        %v287 = vsub.s32 0, %v286
        %v288 = vrot.slane %v283, %v287
        %v290 = vadd.f32 %v281, %v288
        %v291 = vadd.f32 %v282, %v288
        %v292 = vld [vmem:[%s269] sm:$0xf]
        %v293 = vld [vmem:[%s269 + $0x4] sm:$0xf]
        %v294 = vunpack.c.l.bf16 %v292
        %v295 = vunpack.c.l.bf16 %v293
        %v296 = vld [vmem:[%s4] sm:$0x1]
        %v298 = vlaneseq
        %v299 = vshrl.u32 %v298, 7
        %v300 = vsub.s32 0, %v299
        %v301 = vrot.slane %v296, %v300
        %v303 = vmul.f32 %v294, %v301
        %v304 = vmul.f32 %v295, %v301
        %v305 = vld [vmem:[%s5] sm:$0x1]
        %v307 = vlaneseq
        %v308 = vshrl.u32 %v307, 7
        %v309 = vsub.s32 0, %v308
        %v310 = vrot.slane %v305, %v309
        %v312 = vadd.f32 %v303, %v310
        %v313 = vadd.f32 %v304, %v310
        %v314 = vadd.f32 %v290, %v312
        %v315 = vadd.f32 %v291, %v313
        %v316 = vmax.f32 %v314, 0.0
        %v317 = vmax.f32 %v315, 0.0
        %318 = vst [vmem:[%s259] sm:$0xff] %v316
        %319 = vst [vmem:[%s259 + $0x8] sm:$0xff] %v317
        %s320 = sand.u32 %s164, 1
        %s321 = scalar_lea.sflag [#allocation3], %s320
        %s322 = sand.u32 %s164, 1
        %s323 = smul.addr %s322, 16
        %s324 = scalar_lea.vmem [#allocation2], %s323
        // Predicated region
        $region45: #{_forward_impl.5} parent=43 // pred_check
          %p325 = pneg %p174
        $region46: #{_forward_impl.5} parent=43 // pred_check_branch
          %327 = sbr.rel (%p325) target = $region48
        $region47: #{_forward_impl.5} parent=43 // pred_region
          %s329 = ssub.s32 256, 256
          %330 = vsyncadd %s321, %s329
          %s331 = smul.addr %s20, 2
          %s332 = smul.addr %s331, 128
          %s333 = scalar_lea.hbm %s6, %s332
          %s334 = sshll.u32 %s324, 4
          %s335 = int_to_ptr.vmem [resolvable:$true] %s334
          %340 = dma.vmem_to_hbm [thread:$0]  %s335, 256, %s333, %s321, 128, 128, 8
        $region48: #{_forward_impl.5} parent=43 // pred_fallthru
          _
      $region44: #{_forward_impl.5} parent=5 // pred_fallthru
        _
      %p341 = scmp.le.s32.totalorder 2, %s15
      // Predicated region
      $region49: #{_forward_impl.5} parent=5 // pred_check
        %p342 = pneg %p341
      $region50: #{_forward_impl.5} parent=5 // pred_check_branch
        %344 = sbr.rel (%p342) target = $region52
      $region51: #{_forward_impl.5} parent=5 // pred_region
        %s345 = ssub.s32 %s15, 2
        // Predicated region
        $region53: #{_forward_impl.5} parent=51 // pred_check
          %p346 = pneg %p180
        $region54: #{_forward_impl.5} parent=51 // pred_check_branch
          %348 = sbr.rel (%p346) target = $region56
        $region55: #{_forward_impl.5} parent=51 // pred_region
          %s349 = sand.u32 %s165, 1
          %s350 = scalar_lea.sflag [#allocation3], %s349
          %s351 = sand.u32 %s165, 1
          %s352 = smul.addr %s351, 16
          %s353 = scalar_lea.vmem [#allocation2], %s352
          %354 = dma.done %s350, 256
        $region56: #{_forward_impl.5} parent=51 // pred_fallthru
          _
      $region52: #{_forward_impl.5} parent=5 // pred_fallthru
        _
    $region6: #{_forward_impl.5} parent=1 // loop_footer
      %s19 = sadd.s32 1, %s15
    $region7: #{_forward_impl.5} parent=1 // loop_footer_branch
      %14 = sbr.rel target = $region3
    $region8: #{_forward_impl.5} parent=1 // loop_exit
      _
    %355 = vsyncpa [#allocation3], 1
    %s356 = scalar_lea.sflag [#allocation3], 1
    %357 = vsyncpa %s356, 1

// kernel: _forward_impl.3
$region0: #{_forward_impl.3}
  #allocation0 [shape = 'u32[]', space=smem, size = 0x4, offset = 0x4, fixed_abs, tag = 'smem constant byte address 0x4 - core index']
  #allocation1 [shape = 'u32[144,128]{1,0:T(1,128)}', space=vmem, size = 0x12000, scoped, tag = 'internal scratch']
  %s0 = inlined_call_operand.vmem [shape: bf16[2,16,128], index: 0, kind: input, shape index: {}]
  %s1 = inlined_call_operand.vmem [shape: bf16[128,128], index: 1, kind: input, shape index: {}]
  %s2 = inlined_call_operand.vmem [shape: bf16[2,16,128], index: 2, kind: input, shape index: {}]
  %s3 = inlined_call_operand.vmem [shape: bf16[128,128], index: 3, kind: input, shape index: {}]
  %s4 = inlined_call_operand.vmem [shape: bf16[2,16,128], index: 4, kind: output, shape index: {0}]
  %s5 = inlined_call_operand.vmem [shape: f32[2,2,128], index: 5, kind: output, shape index: {1}]
  %s6 = inlined_call_operand.vmem [shape: bf16[2,16,128], index: 6, kind: output, shape index: {2}]
  %s7 = inlined_call_operand.vmem [shape: f32[2,2,128], index: 7, kind: output, shape index: {3}]
  %8 = xla_tuple %s4, %s5, %s6, %s7
  %s9 = sld [smem:[#allocation0]]
  $region73: #{_forward_impl.3} parent=0
    _
  %s11 = ssub.s32 1, %s9
  %s12 = scalar_select 0, %s11, %s9
  loop: start=0, step=1, limit=4
  $region2: #{_forward_impl.3} parent=0 // loop_pre_header
    _
  $region3: #{_forward_impl.3} parent=0 // loop_header
    %s14 = sphi 0, %s18
    %p15 = scmp.ge.s32.totalorder %s14, 4
    %s24 = sphi 0, %s26
    %s27 = sphi 0, %s24
    %s28 = sphi 0, %s27
    %s44 = sphi 0, %s28
    %s48 = sphi 0, %s48
    %s50 = sphi 0, %s48
    %s51 = sphi 0, %s50
    %s65 = sphi 0, %s51
    %s71 = sphi 0, %s73
    %s74 = sphi 0, %s71
    %s75 = sphi 0, %s74
    %s91 = sphi 0, %s75
    %s95 = sphi 0, %s95
    %s97 = sphi 0, %s95
    %s98 = sphi 0, %s97
    %s112 = sphi 0, %s98
    %s118 = sphi 0, %s120
    %s121 = sphi 0, %s118
    %s122 = sphi 0, %s121
    %s138 = sphi 0, %s122
    %s144 = sphi 0, %s146
    %s147 = sphi 0, %s144
    %s148 = sphi 0, %s147
    %s164 = sphi 0, %s148
    %s170 = sphi 0, %s172
    %s173 = sphi 0, %s170
    %s174 = sphi 0, %s173
    %s190 = sphi 0, %s174
    %s196 = sphi 0, %s198
    %s199 = sphi 0, %s196
    %s200 = sphi 0, %s199
    %s216 = sphi 0, %s200
  $region4: #{_forward_impl.3} parent=0 // loop_header_branch
    %17 = sbr.rel (%p15) target = $region8
  $region5: #{_forward_impl.3} parent=0 // loop_body
    %s19 = ssub.s32 %s14, 1
    %s20 = ssub.s32 %s14, 2
    %s21 = sadd.s32 %s14, 1
    %s22 = ssub.s32 %s14, %s21
    %p23 = scmp.eq.s32.totalorder %s22, 0
    %s25 = sadd.s32 %s24, 1
    %s26 = scalar_select %p23, %s24, %s25
    %p29 = pneg %p23
    %p30 = scmp.eq.s32.totalorder %s14, 1
    %p31 = por %p29, %p30
    %p32 = scmp.ne.s32.totalorder %s24, %s27
    %p33 = scmp.eq.s32.totalorder %s14, 0
    %p34 = por %p32, %p33
    %p35 = scmp.ne.s32.totalorder %s24, %s27
    %p36 = scmp.eq.s32.totalorder %s19, 1
    %p37 = por %p35, %p36
    %p38 = scmp.ne.s32.totalorder %s27, %s28
    %p39 = scmp.eq.s32.totalorder %s19, 0
    %p40 = por %p38, %p39
    %p41 = scmp.ne.s32.totalorder %s27, %s28
    %p42 = scmp.eq.s32.totalorder %s20, 1
    %p43 = por %p41, %p42
    %p45 = scmp.ne.s32.totalorder %s28, %s44
    %p46 = scmp.eq.s32.totalorder %s20, 0
    %p47 = por %p45, %p46
    %s49 = sadd.s32 %s48, 1
    %p52 = scmp.eq.s32.totalorder %s14, 1
    %p53 = scmp.ne.s32.totalorder %s48, %s50
    %p54 = scmp.eq.s32.totalorder %s14, 0
    %p55 = por %p53, %p54
    %p56 = scmp.ne.s32.totalorder %s48, %s50
    %p57 = scmp.eq.s32.totalorder %s19, 1
    %p58 = por %p56, %p57
    %p59 = scmp.ne.s32.totalorder %s50, %s51
    %p60 = scmp.eq.s32.totalorder %s19, 0
    %p61 = por %p59, %p60
    %p62 = scmp.ne.s32.totalorder %s50, %s51
    %p63 = scmp.eq.s32.totalorder %s20, 1
    %p64 = por %p62, %p63
    %p66 = scmp.ne.s32.totalorder %s51, %s65
    %p67 = scmp.eq.s32.totalorder %s20, 0
    %p68 = por %p66, %p67
    %s69 = ssub.s32 %s14, %s21
    %p70 = scmp.eq.s32.totalorder %s69, 0
    %s72 = sadd.s32 %s71, 1
    %s73 = scalar_select %p70, %s71, %s72
    %p76 = pneg %p70
    %p77 = scmp.eq.s32.totalorder %s14, 1
    %p78 = por %p76, %p77
    %p79 = scmp.ne.s32.totalorder %s71, %s74
    %p80 = scmp.eq.s32.totalorder %s14, 0
    %p81 = por %p79, %p80
    %p82 = scmp.ne.s32.totalorder %s71, %s74
    %p83 = scmp.eq.s32.totalorder %s19, 1
    %p84 = por %p82, %p83
    %p85 = scmp.ne.s32.totalorder %s74, %s75
    %p86 = scmp.eq.s32.totalorder %s19, 0
    %p87 = por %p85, %p86
    %p88 = scmp.ne.s32.totalorder %s74, %s75
    %p89 = scmp.eq.s32.totalorder %s20, 1
    %p90 = por %p88, %p89
    %p92 = scmp.ne.s32.totalorder %s75, %s91
    %p93 = scmp.eq.s32.totalorder %s20, 0
    %p94 = por %p92, %p93
    %s96 = sadd.s32 %s95, 1
    %p99 = scmp.eq.s32.totalorder %s14, 1
    %p100 = scmp.ne.s32.totalorder %s95, %s97
    %p101 = scmp.eq.s32.totalorder %s14, 0
    %p102 = por %p100, %p101
    %p103 = scmp.ne.s32.totalorder %s95, %s97
    %p104 = scmp.eq.s32.totalorder %s19, 1
    %p105 = por %p103, %p104
    %p106 = scmp.ne.s32.totalorder %s97, %s98
    %p107 = scmp.eq.s32.totalorder %s19, 0
    %p108 = por %p106, %p107
    %p109 = scmp.ne.s32.totalorder %s97, %s98
    %p110 = scmp.eq.s32.totalorder %s20, 1
    %p111 = por %p109, %p110
    %p113 = scmp.ne.s32.totalorder %s98, %s112
    %p114 = scmp.eq.s32.totalorder %s20, 0
    %p115 = por %p113, %p114
    %s116 = ssub.s32 %s14, %s21
    %p117 = scmp.eq.s32.totalorder %s116, 0
    %s119 = sadd.s32 %s118, 1
    %s120 = scalar_select %p117, %s118, %s119
    %p123 = pneg %p117
    %p124 = scmp.eq.s32.totalorder %s14, 1
    %p125 = por %p123, %p124
    %p126 = scmp.ne.s32.totalorder %s118, %s121
    %p127 = scmp.eq.s32.totalorder %s14, 0
    %p128 = por %p126, %p127
    %p129 = scmp.ne.s32.totalorder %s118, %s121
    %p130 = scmp.eq.s32.totalorder %s19, 1
    %p131 = por %p129, %p130
    %p132 = scmp.ne.s32.totalorder %s121, %s122
    %p133 = scmp.eq.s32.totalorder %s19, 0
    %p134 = por %p132, %p133
    %p135 = scmp.ne.s32.totalorder %s121, %s122
    %p136 = scmp.eq.s32.totalorder %s20, 1
    %p137 = por %p135, %p136
    %p139 = scmp.ne.s32.totalorder %s122, %s138
    %p140 = scmp.eq.s32.totalorder %s20, 0
    %p141 = por %p139, %p140
    %s142 = ssub.s32 %s14, %s21
    %p143 = scmp.eq.s32.totalorder %s142, 0
    %s145 = sadd.s32 %s144, 1
    %s146 = scalar_select %p143, %s144, %s145
    %p149 = pneg %p143
    %p150 = scmp.eq.s32.totalorder %s14, 1
    %p151 = por %p149, %p150
    %p152 = scmp.ne.s32.totalorder %s144, %s147
    %p153 = scmp.eq.s32.totalorder %s14, 0
    %p154 = por %p152, %p153
    %p155 = scmp.ne.s32.totalorder %s144, %s147
    %p156 = scmp.eq.s32.totalorder %s19, 1
    %p157 = por %p155, %p156
    %p158 = scmp.ne.s32.totalorder %s147, %s148
    %p159 = scmp.eq.s32.totalorder %s19, 0
    %p160 = por %p158, %p159
    %p161 = scmp.ne.s32.totalorder %s147, %s148
    %p162 = scmp.eq.s32.totalorder %s20, 1
    %p163 = por %p161, %p162
    %p165 = scmp.ne.s32.totalorder %s148, %s164
    %p166 = scmp.eq.s32.totalorder %s20, 0
    %p167 = por %p165, %p166
    %s168 = ssub.s32 %s14, %s21
    %p169 = scmp.eq.s32.totalorder %s168, 0
    %s171 = sadd.s32 %s170, 1
    %s172 = scalar_select %p169, %s170, %s171
    %p175 = pneg %p169
    %p176 = scmp.eq.s32.totalorder %s14, 1
    %p177 = por %p175, %p176
    %p178 = scmp.ne.s32.totalorder %s170, %s173
    %p179 = scmp.eq.s32.totalorder %s14, 0
    %p180 = por %p178, %p179
    %p181 = scmp.ne.s32.totalorder %s170, %s173
    %p182 = scmp.eq.s32.totalorder %s19, 1
    %p183 = por %p181, %p182
    %p184 = scmp.ne.s32.totalorder %s173, %s174
    %p185 = scmp.eq.s32.totalorder %s19, 0
    %p186 = por %p184, %p185
    %p187 = scmp.ne.s32.totalorder %s173, %s174
    %p188 = scmp.eq.s32.totalorder %s20, 1
    %p189 = por %p187, %p188
    %p191 = scmp.ne.s32.totalorder %s174, %s190
    %p192 = scmp.eq.s32.totalorder %s20, 0
    %p193 = por %p191, %p192
    %s194 = ssub.s32 %s14, %s21
    %p195 = scmp.eq.s32.totalorder %s194, 0
    %s197 = sadd.s32 %s196, 1
    %s198 = scalar_select %p195, %s196, %s197
    %p201 = pneg %p195
    %p202 = scmp.eq.s32.totalorder %s14, 1
    %p203 = por %p201, %p202
    %p204 = scmp.ne.s32.totalorder %s196, %s199
    %p205 = scmp.eq.s32.totalorder %s14, 0
    %p206 = por %p204, %p205
    %p207 = scmp.ne.s32.totalorder %s196, %s199
    %p208 = scmp.eq.s32.totalorder %s19, 1
    %p209 = por %p207, %p208
    %p210 = scmp.ne.s32.totalorder %s199, %s200
    %p211 = scmp.eq.s32.totalorder %s19, 0
    %p212 = por %p210, %p211
    %p213 = scmp.ne.s32.totalorder %s199, %s200
    %p214 = scmp.eq.s32.totalorder %s20, 1
    %p215 = por %p213, %p214
    %p217 = scmp.ne.s32.totalorder %s200, %s216
    %p218 = scmp.eq.s32.totalorder %s20, 0
    %p219 = por %p217, %p218
    %p220 = scmp.le.s32.totalorder 1, %s14
    %p221 = scmp.lt.s32.totalorder %s14, 3
    %p222 = pnand %p220, %p221
    %p223 = pneg %p222
    // Predicated region
    $region9: #{_forward_impl.3} parent=5 // pred_check
      _
    $region10: #{_forward_impl.3} parent=5 // pred_check_branch
      %225 = sbr.rel (%p222) target = $region12
    $region11: #{_forward_impl.3} parent=5 // pred_region
      %s226 = ssub.s32 %s14, 1
      // Predicated region
      $region13: #{_forward_impl.3} parent=11 // pred_check
        %p227 = pneg %p61
      $region14: #{_forward_impl.3} parent=11 // pred_check_branch
        %229 = sbr.rel (%p227) target = $region16
      $region15: #{_forward_impl.3} parent=11 // pred_region
        _
      $region16: #{_forward_impl.3} parent=11 // pred_fallthru
        _
      // Predicated region
      $region17: #{_forward_impl.3} parent=11 // pred_check
        %p230 = pneg %p108
      $region18: #{_forward_impl.3} parent=11 // pred_check_branch
        %232 = sbr.rel (%p230) target = $region20
      $region19: #{_forward_impl.3} parent=11 // pred_region
        _
      $region20: #{_forward_impl.3} parent=11 // pred_fallthru
        _
    $region12: #{_forward_impl.3} parent=5 // pred_fallthru
      _
    %p233 = scmp.lt.s32.totalorder %s14, 2
    // Predicated region
    $region21: #{_forward_impl.3} parent=5 // pred_check
      %p234 = pneg %p233
    $region22: #{_forward_impl.3} parent=5 // pred_check_branch
      %236 = sbr.rel (%p234) target = $region24
    $region23: #{_forward_impl.3} parent=5 // pred_region
      // Predicated region
      $region25: #{_forward_impl.3} parent=23 // pred_check
        %p237 = pneg %p34
      $region26: #{_forward_impl.3} parent=23 // pred_check_branch
        %239 = sbr.rel (%p237) target = $region28
      $region27: #{_forward_impl.3} parent=23 // pred_region
        %p240 = scmp.lt.s32.totalorder %s14, 1
        %s241 = scalar_select %p240, %s14, 1
        %s242 = smul.addr %s241, 2
        %s243 = smul.addr %s242, 4
        %s244 = scalar_lea.vmem %s0, %s243
      $region28: #{_forward_impl.3} parent=23 // pred_fallthru
        _
      // Predicated region
      $region29: #{_forward_impl.3} parent=23 // pred_check
        %p245 = pneg %p81
      $region30: #{_forward_impl.3} parent=23 // pred_check_branch
        %247 = sbr.rel (%p245) target = $region32
      $region31: #{_forward_impl.3} parent=23 // pred_region
        %p248 = scmp.lt.s32.totalorder %s14, 1
        %s249 = scalar_select %p248, %s14, 1
        %s250 = smul.addr %s249, 2
        %s251 = smul.addr %s250, 4
        %s252 = scalar_lea.vmem %s2, %s251
      $region32: #{_forward_impl.3} parent=23 // pred_fallthru
        _
    $region24: #{_forward_impl.3} parent=5 // pred_fallthru
      _
    %p253 = scmp.le.s32.totalorder 1, %s14
    %p254 = scmp.lt.s32.totalorder %s14, 3
    %p255 = pnand %p253, %p254
    %p256 = pneg %p255
    // Predicated region
    $region33: #{_forward_impl.3} parent=5 // pred_check
      _
    $region34: #{_forward_impl.3} parent=5 // pred_check_branch
      %258 = sbr.rel (%p255) target = $region36
    $region35: #{_forward_impl.3} parent=5 // pred_region
      %s259 = ssub.s32 %s14, 1
      %p260 = scmp.lt.s32.totalorder %s19, 1
      %s261 = scalar_select %p260, %s19, 1
      %s262 = smul.addr %s261, 2
      %s263 = smul.addr %s262, 4
      %s264 = scalar_lea.vmem %s0, %s263
      %p265 = pneg %p40
      %p266 = pneg %p37
      %p267 = pneg %p61
      %p268 = pneg %p58
      %p269 = scmp.lt.s32.totalorder %s19, 1
      %s270 = scalar_select %p269, %s19, 1
      %s271 = smul.addr %s270, 2
      %s272 = smul.addr %s271, 4
      %s273 = scalar_lea.vmem %s2, %s272
      %p274 = pneg %p87
      %p275 = pneg %p84
      %p276 = pneg %p108
      %p277 = pneg %p105
      %p278 = pneg %p134
      %p279 = pneg %p131
      %p280 = scmp.lt.s32.totalorder %s19, 1
      %s281 = scalar_select %p280, %s19, 1
      %s282 = smul.addr %s281, 2
      %s283 = smul.addr %s282, 4
      %s284 = scalar_lea.vmem %s4, %s283
      %p285 = pneg %p160
      %p286 = pneg %p157
      %p287 = scmp.lt.s32.totalorder %s19, 1
      %s288 = scalar_select %p287, %s19, 1
      %s289 = smul.addr %s288, 2
      %s290 = scalar_lea.vmem %s5, %s289
      %p291 = pneg %p186
      %p292 = pneg %p183
      %p293 = scmp.lt.s32.totalorder %s19, 1
      %s294 = scalar_select %p293, %s19, 1
      %s295 = smul.addr %s294, 2
      %s296 = smul.addr %s295, 4
      %s297 = scalar_lea.vmem %s6, %s296
      %p298 = pneg %p212
      %p299 = pneg %p209
      %p300 = scmp.lt.s32.totalorder %s19, 1
      %s301 = scalar_select %p300, %s19, 1
      %s302 = smul.addr %s301, 2
      %s303 = scalar_lea.vmem %s7, %s302
      %p304 = scmp.lt.s32.totalorder %s19, 1
      %s305 = scalar_select %p304, %s19, 1
      %s306 = smul.addr %s305, 2
      %s307 = smul.addr %s306, 4
      %s308 = scalar_lea.vmem %s0, %s307
      %p309 = scmp.lt.s32.totalorder %s19, 1
      %s310 = scalar_select %p309, %s19, 1
      %s311 = smul.addr %s310, 2
      %s312 = smul.addr %s311, 4
      %s313 = scalar_lea.vmem %s2, %s312
      %p314 = scmp.lt.s32.totalorder %s19, 1
      %s315 = scalar_select %p314, %s19, 1
      %s316 = smul.addr %s315, 2
      %s317 = smul.addr %s316, 4
      %s318 = scalar_lea.vmem %s4, %s317
      %p319 = scmp.lt.s32.totalorder %s19, 1
      %s320 = scalar_select %p319, %s19, 1
      %s321 = smul.addr %s320, 2
      %s322 = scalar_lea.vmem %s5, %s321
      %p323 = scmp.lt.s32.totalorder %s19, 1
      %s324 = scalar_select %p323, %s19, 1
      %s325 = smul.addr %s324, 2
      %s326 = smul.addr %s325, 4
      %s327 = scalar_lea.vmem %s6, %s326
      %p328 = scmp.lt.s32.totalorder %s19, 1
      %s329 = scalar_select %p328, %s19, 1
      %s330 = smul.addr %s329, 2
      %s331 = scalar_lea.vmem %s7, %s330
      %v333 = vld [vmem:[%s308] sm:$0xf]
      %v334 = vld [vmem:[%s308 + $0x4] sm:$0xf]
      %v335 = vld [vmem:[%s1] sm:$0xf]
      %v336 = vld [vmem:[%s1 + $0x4] sm:$0xf]
      %v337 = vld [vmem:[%s1 + $0x8] sm:$0xf]
      %v338 = vld [vmem:[%s1 + $0xc] sm:$0xf]
      %v339 = vld [vmem:[%s1 + $0x10] sm:$0xf]
      %v340 = vld [vmem:[%s1 + $0x14] sm:$0xf]
      %v341 = vld [vmem:[%s1 + $0x18] sm:$0xf]
      %v342 = vld [vmem:[%s1 + $0x1c] sm:$0xf]
      %v343 = vld [vmem:[%s1 + $0x20] sm:$0xf]
      %v344 = vld [vmem:[%s1 + $0x24] sm:$0xf]
      %v345 = vld [vmem:[%s1 + $0x28] sm:$0xf]
      %v346 = vld [vmem:[%s1 + $0x2c] sm:$0xf]
      %v347 = vld [vmem:[%s1 + $0x30] sm:$0xf]
      %v348 = vld [vmem:[%s1 + $0x34] sm:$0xf]
      %v349 = vld [vmem:[%s1 + $0x38] sm:$0xf]
      %v350 = vld [vmem:[%s1 + $0x3c] sm:$0xf]
      %v353 = vunpack.c.l.b16 %v333
      %v354 = vunpack.c.l.b16 %v334
      %v355 = vpack.c.b16 %v354, %v353
      %v373 = vunpack.c.l.b16 %v335
      %v374 = vunpack.c.l.b16 %v336
      %v375 = vunpack.c.l.b16 %v337
      %v376 = vunpack.c.l.b16 %v338
      %v377 = vunpack.c.l.b16 %v339
      %v378 = vunpack.c.l.b16 %v340
      %v379 = vunpack.c.l.b16 %v341
      %v380 = vunpack.c.l.b16 %v342
      %v381 = vunpack.c.l.b16 %v343
      %v382 = vunpack.c.l.b16 %v344
      %v383 = vunpack.c.l.b16 %v345
      %v384 = vunpack.c.l.b16 %v346
      %v385 = vunpack.c.l.b16 %v347
      %v386 = vunpack.c.l.b16 %v348
      %v387 = vunpack.c.l.b16 %v349
      %v388 = vunpack.c.l.b16 %v350
      %v389 = vpack.c.b16 %v374, %v373
      %v390 = vpack.c.b16 %v376, %v375
      %v391 = vpack.c.b16 %v378, %v377
      %v392 = vpack.c.b16 %v380, %v379
      %v393 = vpack.c.b16 %v382, %v381
      %v394 = vpack.c.b16 %v384, %v383
      %v395 = vpack.c.b16 %v386, %v385
      %v396 = vpack.c.b16 %v388, %v387
      %405 = vmatprep.subr.bf16.mxu0 0
      %406 = vmatpush1.bf16.msra.mxu0 %v396
      %407 = vmatprep.subr.bf16.mxu0 0
      %408 = vmatpush1.bf16.msra.mxu0 %v395
      %409 = vmatprep.subr.bf16.mxu0 0
      %410 = vmatpush1.bf16.msra.mxu0 %v394
      %411 = vmatprep.subr.bf16.mxu0 0
      %412 = vmatpush1.bf16.msra.mxu0 %v393
      %413 = vmatprep.subr.bf16.mxu0 0
      %414 = vmatpush1.bf16.msra.mxu0 %v392
      %415 = vmatprep.subr.bf16.mxu0 0
      %416 = vmatpush1.bf16.msra.mxu0 %v391
      %417 = vmatprep.subr.bf16.mxu0 0
      %418 = vmatpush1.bf16.msra.mxu0 %v390
      %419 = vmatprep.subr.bf16.mxu0 0
      %420 = vmatpush1.bf16.msra.mxu0 %v389
      %421 = vmatprep.subr.bf16.mxu0 0
      %422 = vmatpush2.bf16.msra.mxu0 0
      %423 = vmatprep.subr.bf16.mxu0 0
      %424 = vmatpush2.bf16.msra.mxu0 0
      %425 = vmatprep.subr.bf16.mxu0 0
      %426 = vmatpush2.bf16.msra.mxu0 0
      %427 = vmatprep.subr.bf16.mxu0 0
      %428 = vmatpush2.bf16.msra.mxu0 0
      %429 = vmatprep.subr.bf16.mxu0 0
      %430 = vmatpush2.bf16.msra.mxu0 0
      %431 = vmatprep.subr.bf16.mxu0 0
      %432 = vmatpush2.bf16.msra.mxu0 0
      %433 = vmatprep.subr.bf16.mxu0 0
      %434 = vmatpush2.bf16.msra.mxu0 0
      %435 = vmatprep.subr.bf16.mxu0 0
      %436 = vmatpush2.bf16.msra.mxu0 0
      %437 = vmatprep.mubr.bf16.mxu0 0
      %438 = vmatmul.mubr.bf16.gmra.mxu0 %v355
      %v439 = vpop.f32.mrf.mxu0
      %v440 = vadd.f32 0.0, %v439
      %v441 = vpop.f32.mrf.mxu0
      %v442 = vpop.f32.mrf.mxu0
      %v443 = vadd.f32 0.0, %v442
      %v444 = vpop.f32.mrf.mxu0
      %445 = vdwg.mxu0
      %v446 = vadd.f32 %v440, %v443
      %v447 = vrot.slane %v446, 4
      %v448 = vadd.f32 %v446, %v447
      %v449 = vrot.slane %v448, 2
      %v450 = vadd.f32 %v448, %v449
      %v451 = vrot.slane %v450, 1
      %v452 = vadd.f32 %v450, %v451
      %v453 = vmul.f32 %v452, 0.0625
      %v454 = vsub.f32 %v440, %v453
      %v455 = vsub.f32 %v443, %v453
      %v456 = vmul.f32 %v454, %v454
      %v457 = vmul.f32 %v455, %v455
      %v458 = vadd.f32 %v456, %v457
      %v459 = vrot.slane %v458, 4
      %v460 = vadd.f32 %v458, %v459
      %v461 = vrot.slane %v460, 2
      %v462 = vadd.f32 %v460, %v461
      %v463 = vrot.slane %v462, 1
      %v464 = vadd.f32 %v462, %v463
      %vm465 = vcmask 1040384
      %v466 = vsel %vm465, %v452, %v464
      %467 = vst [vmem:[%s322] sm:$0x3] %v466
      %v468 = vpack.c.bf16 %v443, %v440
      %v470 = vunpack.c.l.b16 %v468
      %v471 = vunpack.c.h.b16 %v468
      %v472 = vpack.c.b16 %v470, %v470
      %v473 = vpack.c.b16 %v471, %v471
      %476 = vst [vmem:[%s318] sm:$0xf] %v472
      %477 = vst [vmem:[%s318 + $0x4] sm:$0xf] %v473
      %v478 = vld [vmem:[%s313] sm:$0xf]
      %v479 = vld [vmem:[%s313 + $0x4] sm:$0xf]
      %v480 = vld [vmem:[%s3] sm:$0xf]
      %v481 = vld [vmem:[%s3 + $0x4] sm:$0xf]
      %v482 = vld [vmem:[%s3 + $0x8] sm:$0xf]
      %v483 = vld [vmem:[%s3 + $0xc] sm:$0xf]
      %v484 = vld [vmem:[%s3 + $0x10] sm:$0xf]
      %v485 = vld [vmem:[%s3 + $0x14] sm:$0xf]
      %v486 = vld [vmem:[%s3 + $0x18] sm:$0xf]
      %v487 = vld [vmem:[%s3 + $0x1c] sm:$0xf]
      %v488 = vld [vmem:[%s3 + $0x20] sm:$0xf]
      %v489 = vld [vmem:[%s3 + $0x24] sm:$0xf]
      %v490 = vld [vmem:[%s3 + $0x28] sm:$0xf]
      %v491 = vld [vmem:[%s3 + $0x2c] sm:$0xf]
      %v492 = vld [vmem:[%s3 + $0x30] sm:$0xf]
      %v493 = vld [vmem:[%s3 + $0x34] sm:$0xf]
      %v494 = vld [vmem:[%s3 + $0x38] sm:$0xf]
      %v495 = vld [vmem:[%s3 + $0x3c] sm:$0xf]
      %v498 = vunpack.c.l.b16 %v478
      %v499 = vunpack.c.l.b16 %v479
      %v500 = vpack.c.b16 %v499, %v498
      %v518 = vunpack.c.l.b16 %v480
      %v519 = vunpack.c.l.b16 %v481
      %v520 = vunpack.c.l.b16 %v482
      %v521 = vunpack.c.l.b16 %v483
      %v522 = vunpack.c.l.b16 %v484
      %v523 = vunpack.c.l.b16 %v485
      %v524 = vunpack.c.l.b16 %v486
      %v525 = vunpack.c.l.b16 %v487
      %v526 = vunpack.c.l.b16 %v488
      %v527 = vunpack.c.l.b16 %v489
      %v528 = vunpack.c.l.b16 %v490
      %v529 = vunpack.c.l.b16 %v491
      %v530 = vunpack.c.l.b16 %v492
      %v531 = vunpack.c.l.b16 %v493
      %v532 = vunpack.c.l.b16 %v494
      %v533 = vunpack.c.l.b16 %v495
      %v534 = vpack.c.b16 %v519, %v518
      %v535 = vpack.c.b16 %v521, %v520
      %v536 = vpack.c.b16 %v523, %v522
      %v537 = vpack.c.b16 %v525, %v524
      %v538 = vpack.c.b16 %v527, %v526
      %v539 = vpack.c.b16 %v529, %v528
      %v540 = vpack.c.b16 %v531, %v530
      %v541 = vpack.c.b16 %v533, %v532
      %550 = vmatprep.subr.bf16.mxu0 0
      %551 = vmatpush1.bf16.msra.mxu0 %v541
      %552 = vmatprep.subr.bf16.mxu0 0
      %553 = vmatpush1.bf16.msra.mxu0 %v540
      %554 = vmatprep.subr.bf16.mxu0 0
      %555 = vmatpush1.bf16.msra.mxu0 %v539
      %556 = vmatprep.subr.bf16.mxu0 0
      %557 = vmatpush1.bf16.msra.mxu0 %v538
      %558 = vmatprep.subr.bf16.mxu0 0
      %559 = vmatpush1.bf16.msra.mxu0 %v537
      %560 = vmatprep.subr.bf16.mxu0 0
      %561 = vmatpush1.bf16.msra.mxu0 %v536
      %562 = vmatprep.subr.bf16.mxu0 0
      %563 = vmatpush1.bf16.msra.mxu0 %v535
      %564 = vmatprep.subr.bf16.mxu0 0
      %565 = vmatpush1.bf16.msra.mxu0 %v534
      %566 = vmatprep.subr.bf16.mxu0 0
      %567 = vmatpush2.bf16.msra.mxu0 0
      %568 = vmatprep.subr.bf16.mxu0 0
      %569 = vmatpush2.bf16.msra.mxu0 0
      %570 = vmatprep.subr.bf16.mxu0 0
      %571 = vmatpush2.bf16.msra.mxu0 0
      %572 = vmatprep.subr.bf16.mxu0 0
      %573 = vmatpush2.bf16.msra.mxu0 0
      %574 = vmatprep.subr.bf16.mxu0 0
      %575 = vmatpush2.bf16.msra.mxu0 0
      %576 = vmatprep.subr.bf16.mxu0 0
      %577 = vmatpush2.bf16.msra.mxu0 0
      %578 = vmatprep.subr.bf16.mxu0 0
      %579 = vmatpush2.bf16.msra.mxu0 0
      %580 = vmatprep.subr.bf16.mxu0 0
      %581 = vmatpush2.bf16.msra.mxu0 0
      %582 = vmatprep.mubr.bf16.mxu0 0
      %583 = vmatmul.mubr.bf16.gmra.mxu0 %v500
      %v584 = vpop.f32.mrf.mxu0
      %v585 = vadd.f32 0.0, %v584
      %v586 = vpop.f32.mrf.mxu0
      %v587 = vpop.f32.mrf.mxu0
      %v588 = vadd.f32 0.0, %v587
      %v589 = vpop.f32.mrf.mxu0
      %590 = vdwg.mxu0
      %v591 = vadd.f32 %v585, %v588
      %v592 = vrot.slane %v591, 4
      %v593 = vadd.f32 %v591, %v592
      %v594 = vrot.slane %v593, 2
      %v595 = vadd.f32 %v593, %v594
      %v596 = vrot.slane %v595, 1
      %v597 = vadd.f32 %v595, %v596
      %v598 = vmul.f32 %v597, 0.0625
      %v599 = vsub.f32 %v585, %v598
      %v600 = vsub.f32 %v588, %v598
      %v601 = vmul.f32 %v599, %v599
      %v602 = vmul.f32 %v600, %v600
      %v603 = vadd.f32 %v601, %v602
      %v604 = vrot.slane %v603, 4
      %v605 = vadd.f32 %v603, %v604
      %v606 = vrot.slane %v605, 2
      %v607 = vadd.f32 %v605, %v606
      %v608 = vrot.slane %v607, 1
      %v609 = vadd.f32 %v607, %v608
      %v610 = vsel %vm465, %v597, %v609
      %611 = vst [vmem:[%s331] sm:$0x3] %v610
      %v612 = vpack.c.bf16 %v588, %v585
      %v614 = vunpack.c.l.b16 %v612
      %v615 = vunpack.c.h.b16 %v612
      %v616 = vpack.c.b16 %v614, %v614
      %v617 = vpack.c.b16 %v615, %v615
      %620 = vst [vmem:[%s327] sm:$0xf] %v616
      %621 = vst [vmem:[%s327 + $0x4] sm:$0xf] %v617
      %p622 = scmp.lt.s32.totalorder %s19, 1
      %s623 = scalar_select %p622, %s19, 1
      %s624 = smul.addr %s623, 2
      %s625 = smul.addr %s624, 4
      %s626 = scalar_lea.vmem %s4, %s625
      %p627 = scmp.lt.s32.totalorder %s19, 1
      %s628 = scalar_select %p627, %s19, 1
      %s629 = smul.addr %s628, 2
      %s630 = scalar_lea.vmem %s5, %s629
      %p631 = scmp.lt.s32.totalorder %s19, 1
      %s632 = scalar_select %p631, %s19, 1
      %s633 = smul.addr %s632, 2
      %s634 = smul.addr %s633, 4
      %s635 = scalar_lea.vmem %s6, %s634
      %p636 = scmp.lt.s32.totalorder %s19, 1
      %s637 = scalar_select %p636, %s19, 1
      %s638 = smul.addr %s637, 2
      %s639 = scalar_lea.vmem %s7, %s638
      // Predicated region
      $region37: #{_forward_impl.3} parent=35 // pred_check
        %p640 = pneg %p131
      $region38: #{_forward_impl.3} parent=35 // pred_check_branch
        %642 = sbr.rel (%p640) target = $region40
      $region39: #{_forward_impl.3} parent=35 // pred_region
        _
      $region40: #{_forward_impl.3} parent=35 // pred_fallthru
        _
      // Predicated region
      $region41: #{_forward_impl.3} parent=35 // pred_check
        %p643 = pneg %p157
      $region42: #{_forward_impl.3} parent=35 // pred_check_branch
        %645 = sbr.rel (%p643) target = $region44
      $region43: #{_forward_impl.3} parent=35 // pred_region
        _
      $region44: #{_forward_impl.3} parent=35 // pred_fallthru
        _
      // Predicated region
      $region45: #{_forward_impl.3} parent=35 // pred_check
        %p646 = pneg %p183
      $region46: #{_forward_impl.3} parent=35 // pred_check_branch
        %648 = sbr.rel (%p646) target = $region48
      $region47: #{_forward_impl.3} parent=35 // pred_region
        _
      $region48: #{_forward_impl.3} parent=35 // pred_fallthru
        _
      // Predicated region
      $region49: #{_forward_impl.3} parent=35 // pred_check
        %p649 = pneg %p209
      $region50: #{_forward_impl.3} parent=35 // pred_check_branch
        %651 = sbr.rel (%p649) target = $region52
      $region51: #{_forward_impl.3} parent=35 // pred_region
        _
      $region52: #{_forward_impl.3} parent=35 // pred_fallthru
        _
    $region36: #{_forward_impl.3} parent=5 // pred_fallthru
      _
    %p652 = scmp.le.s32.totalorder 2, %s14
    // Predicated region
    $region53: #{_forward_impl.3} parent=5 // pred_check
      %p653 = pneg %p652
    $region54: #{_forward_impl.3} parent=5 // pred_check_branch
      %655 = sbr.rel (%p653) target = $region56
    $region55: #{_forward_impl.3} parent=5 // pred_region
      %s656 = ssub.s32 %s14, 2
      // Predicated region
      $region57: #{_forward_impl.3} parent=55 // pred_check
        %p657 = pneg %p137
      $region58: #{_forward_impl.3} parent=55 // pred_check_branch
        %659 = sbr.rel (%p657) target = $region60
      $region59: #{_forward_impl.3} parent=55 // pred_region
        %p660 = scmp.lt.s32.totalorder %s20, 1
        %s661 = scalar_select %p660, %s20, 1
        %s662 = smul.addr %s661, 2
        %s663 = smul.addr %s662, 4
        %s664 = scalar_lea.vmem %s4, %s663
      $region60: #{_forward_impl.3} parent=55 // pred_fallthru
        _
      // Predicated region
      $region61: #{_forward_impl.3} parent=55 // pred_check
        %p665 = pneg %p163
      $region62: #{_forward_impl.3} parent=55 // pred_check_branch
        %667 = sbr.rel (%p665) target = $region64
      $region63: #{_forward_impl.3} parent=55 // pred_region
        %p668 = scmp.lt.s32.totalorder %s20, 1
        %s669 = scalar_select %p668, %s20, 1
        %s670 = smul.addr %s669, 2
        %s671 = scalar_lea.vmem %s5, %s670
      $region64: #{_forward_impl.3} parent=55 // pred_fallthru
        _
      // Predicated region
      $region65: #{_forward_impl.3} parent=55 // pred_check
        %p672 = pneg %p189
      $region66: #{_forward_impl.3} parent=55 // pred_check_branch
        %674 = sbr.rel (%p672) target = $region68
      $region67: #{_forward_impl.3} parent=55 // pred_region
        %p675 = scmp.lt.s32.totalorder %s20, 1
        %s676 = scalar_select %p675, %s20, 1
        %s677 = smul.addr %s676, 2
        %s678 = smul.addr %s677, 4
        %s679 = scalar_lea.vmem %s6, %s678
      $region68: #{_forward_impl.3} parent=55 // pred_fallthru
        _
      // Predicated region
      $region69: #{_forward_impl.3} parent=55 // pred_check
        %p680 = pneg %p215
      $region70: #{_forward_impl.3} parent=55 // pred_check_branch
        %682 = sbr.rel (%p680) target = $region72
      $region71: #{_forward_impl.3} parent=55 // pred_region
        %p683 = scmp.lt.s32.totalorder %s20, 1
        %s684 = scalar_select %p683, %s20, 1
        %s685 = smul.addr %s684, 2
        %s686 = scalar_lea.vmem %s7, %s685
      $region72: #{_forward_impl.3} parent=55 // pred_fallthru
        _
    $region56: #{_forward_impl.3} parent=5 // pred_fallthru
      _
  $region6: #{_forward_impl.3} parent=0 // loop_footer
    %s18 = sadd.s32 1, %s14
  $region7: #{_forward_impl.3} parent=0 // loop_footer_branch
    %13 = sbr.rel target = $region3
  $region8: #{_forward_impl.3} parent=0 // loop_exit
    _

// kernel: _forward_impl.4
$region0: #{_forward_impl.4}
  #allocation0 [shape = 'u32[]', space=smem, size = 0x4, offset = 0x4, fixed_abs, tag = 'smem constant byte address 0x4 - core index']
  #allocation1 [shape = 'u32[144,128]{1,0:T(1,128)}', space=vmem, size = 0x12000, scoped, tag = 'internal scratch']
  #allocation2 [shape = 'bf16[24,384]{1,0:T(8,128)(2,1)}', space=vmem, size = 0x4800, scoped, tag = 'scratch operand']
  %s0 = inlined_call_operand.vmem [shape: bf16[2,16,128], index: 0, kind: input, shape index: {}]
  %s1 = inlined_call_operand.vmem [shape: f32[1,128], index: 1, kind: input, shape index: {}]
  %s2 = inlined_call_operand.vmem [shape: f32[1,128], index: 2, kind: input, shape index: {}]
  %s3 = inlined_call_operand.vmem [shape: bf16[3,384,128], index: 3, kind: input, shape index: {}]
  %s4 = inlined_call_operand.vmem [shape: bf16[2,16,128], index: 4, kind: output, shape index: {0}]
  %s5 = inlined_call_operand.vmem [shape: f32[2,2,128], index: 5, kind: output, shape index: {1}]
  %6 = xla_tuple %s4, %s5
  %s7 = sld [smem:[#allocation0]]
  $region57: #{_forward_impl.4} parent=0
    _
  %s9 = ssub.s32 1, %s7
  %s10 = scalar_select 0, %s9, %s7
  loop: start=0, step=1, limit=4
  $region2: #{_forward_impl.4} parent=0 // loop_pre_header
    _
  $region3: #{_forward_impl.4} parent=0 // loop_header
    %s12 = sphi 0, %s16
    %p13 = scmp.ge.s32.totalorder %s12, 4
    %s22 = sphi 0, %s24
    %s25 = sphi 0, %s22
    %s26 = sphi 0, %s25
    %s42 = sphi 0, %s26
    %s46 = sphi 0, %s46
    %s48 = sphi 0, %s46
    %s49 = sphi 0, %s48
    %s63 = sphi 0, %s49
    %s67 = sphi 0, %s67
    %s69 = sphi 0, %s67
    %s70 = sphi 0, %s69
    %s84 = sphi 0, %s70
    %s88 = sphi 0, %s88
    %s90 = sphi 0, %s88
    %s91 = sphi 0, %s90
    %s105 = sphi 0, %s91
    %s111 = sphi 0, %s113
    %s114 = sphi 0, %s111
    %s115 = sphi 0, %s114
    %s131 = sphi 0, %s115
    %s137 = sphi 0, %s139
    %s140 = sphi 0, %s137
    %s141 = sphi 0, %s140
    %s157 = sphi 0, %s141
  $region4: #{_forward_impl.4} parent=0 // loop_header_branch
    %15 = sbr.rel (%p13) target = $region8
  $region5: #{_forward_impl.4} parent=0 // loop_body
    %s17 = ssub.s32 %s12, 1
    %s18 = ssub.s32 %s12, 2
    %s19 = sadd.s32 %s12, 1
    %s20 = ssub.s32 %s12, %s19
    %p21 = scmp.eq.s32.totalorder %s20, 0
    %s23 = sadd.s32 %s22, 1
    %s24 = scalar_select %p21, %s22, %s23
    %p27 = pneg %p21
    %p28 = scmp.eq.s32.totalorder %s12, 1
    %p29 = por %p27, %p28
    %p30 = scmp.ne.s32.totalorder %s22, %s25
    %p31 = scmp.eq.s32.totalorder %s12, 0
    %p32 = por %p30, %p31
    %p33 = scmp.ne.s32.totalorder %s22, %s25
    %p34 = scmp.eq.s32.totalorder %s17, 1
    %p35 = por %p33, %p34
    %p36 = scmp.ne.s32.totalorder %s25, %s26
    %p37 = scmp.eq.s32.totalorder %s17, 0
    %p38 = por %p36, %p37
    %p39 = scmp.ne.s32.totalorder %s25, %s26
    %p40 = scmp.eq.s32.totalorder %s18, 1
    %p41 = por %p39, %p40
    %p43 = scmp.ne.s32.totalorder %s26, %s42
    %p44 = scmp.eq.s32.totalorder %s18, 0
    %p45 = por %p43, %p44
    %s47 = sadd.s32 %s46, 1
    %p50 = scmp.eq.s32.totalorder %s12, 1
    %p51 = scmp.ne.s32.totalorder %s46, %s48
    %p52 = scmp.eq.s32.totalorder %s12, 0
    %p53 = por %p51, %p52
    %p54 = scmp.ne.s32.totalorder %s46, %s48
    %p55 = scmp.eq.s32.totalorder %s17, 1
    %p56 = por %p54, %p55
    %p57 = scmp.ne.s32.totalorder %s48, %s49
    %p58 = scmp.eq.s32.totalorder %s17, 0
    %p59 = por %p57, %p58
    %p60 = scmp.ne.s32.totalorder %s48, %s49
    %p61 = scmp.eq.s32.totalorder %s18, 1
    %p62 = por %p60, %p61
    %p64 = scmp.ne.s32.totalorder %s49, %s63
    %p65 = scmp.eq.s32.totalorder %s18, 0
    %p66 = por %p64, %p65
    %s68 = sadd.s32 %s67, 1
    %p71 = scmp.eq.s32.totalorder %s12, 1
    %p72 = scmp.ne.s32.totalorder %s67, %s69
    %p73 = scmp.eq.s32.totalorder %s12, 0
    %p74 = por %p72, %p73
    %p75 = scmp.ne.s32.totalorder %s67, %s69
    %p76 = scmp.eq.s32.totalorder %s17, 1
    %p77 = por %p75, %p76
    %p78 = scmp.ne.s32.totalorder %s69, %s70
    %p79 = scmp.eq.s32.totalorder %s17, 0
    %p80 = por %p78, %p79
    %p81 = scmp.ne.s32.totalorder %s69, %s70
    %p82 = scmp.eq.s32.totalorder %s18, 1
    %p83 = por %p81, %p82
    %p85 = scmp.ne.s32.totalorder %s70, %s84
    %p86 = scmp.eq.s32.totalorder %s18, 0
    %p87 = por %p85, %p86
    %s89 = sadd.s32 %s88, 1
    %p92 = scmp.eq.s32.totalorder %s12, 1
    %p93 = scmp.ne.s32.totalorder %s88, %s90
    %p94 = scmp.eq.s32.totalorder %s12, 0
    %p95 = por %p93, %p94
    %p96 = scmp.ne.s32.totalorder %s88, %s90
    %p97 = scmp.eq.s32.totalorder %s17, 1
    %p98 = por %p96, %p97
    %p99 = scmp.ne.s32.totalorder %s90, %s91
    %p100 = scmp.eq.s32.totalorder %s17, 0
    %p101 = por %p99, %p100
    %p102 = scmp.ne.s32.totalorder %s90, %s91
    %p103 = scmp.eq.s32.totalorder %s18, 1
    %p104 = por %p102, %p103
    %p106 = scmp.ne.s32.totalorder %s91, %s105
    %p107 = scmp.eq.s32.totalorder %s18, 0
    %p108 = por %p106, %p107
    %s109 = ssub.s32 %s12, %s19
    %p110 = scmp.eq.s32.totalorder %s109, 0
    %s112 = sadd.s32 %s111, 1
    %s113 = scalar_select %p110, %s111, %s112
    %p116 = pneg %p110
    %p117 = scmp.eq.s32.totalorder %s12, 1
    %p118 = por %p116, %p117
    %p119 = scmp.ne.s32.totalorder %s111, %s114
    %p120 = scmp.eq.s32.totalorder %s12, 0
    %p121 = por %p119, %p120
    %p122 = scmp.ne.s32.totalorder %s111, %s114
    %p123 = scmp.eq.s32.totalorder %s17, 1
    %p124 = por %p122, %p123
    %p125 = scmp.ne.s32.totalorder %s114, %s115
    %p126 = scmp.eq.s32.totalorder %s17, 0
    %p127 = por %p125, %p126
    %p128 = scmp.ne.s32.totalorder %s114, %s115
    %p129 = scmp.eq.s32.totalorder %s18, 1
    %p130 = por %p128, %p129
    %p132 = scmp.ne.s32.totalorder %s115, %s131
    %p133 = scmp.eq.s32.totalorder %s18, 0
    %p134 = por %p132, %p133
    %s135 = ssub.s32 %s12, %s19
    %p136 = scmp.eq.s32.totalorder %s135, 0
    %s138 = sadd.s32 %s137, 1
    %s139 = scalar_select %p136, %s137, %s138
    %p142 = pneg %p136
    %p143 = scmp.eq.s32.totalorder %s12, 1
    %p144 = por %p142, %p143
    %p145 = scmp.ne.s32.totalorder %s137, %s140
    %p146 = scmp.eq.s32.totalorder %s12, 0
    %p147 = por %p145, %p146
    %p148 = scmp.ne.s32.totalorder %s137, %s140
    %p149 = scmp.eq.s32.totalorder %s17, 1
    %p150 = por %p148, %p149
    %p151 = scmp.ne.s32.totalorder %s140, %s141
    %p152 = scmp.eq.s32.totalorder %s17, 0
    %p153 = por %p151, %p152
    %p154 = scmp.ne.s32.totalorder %s140, %s141
    %p155 = scmp.eq.s32.totalorder %s18, 1
    %p156 = por %p154, %p155
    %p158 = scmp.ne.s32.totalorder %s141, %s157
    %p159 = scmp.eq.s32.totalorder %s18, 0
    %p160 = por %p158, %p159
    %p161 = scmp.le.s32.totalorder 1, %s12
    %p162 = scmp.lt.s32.totalorder %s12, 3
    %p163 = pnand %p161, %p162
    %p164 = pneg %p163
    // Predicated region
    $region9: #{_forward_impl.4} parent=5 // pred_check
      _
    $region10: #{_forward_impl.4} parent=5 // pred_check_branch
      %166 = sbr.rel (%p163) target = $region12
    $region11: #{_forward_impl.4} parent=5 // pred_region
      %s167 = ssub.s32 %s12, 1
      // Predicated region
      $region13: #{_forward_impl.4} parent=11 // pred_check
        %p168 = pneg %p59
      $region14: #{_forward_impl.4} parent=11 // pred_check_branch
        %170 = sbr.rel (%p168) target = $region16
      $region15: #{_forward_impl.4} parent=11 // pred_region
        _
      $region16: #{_forward_impl.4} parent=11 // pred_fallthru
        _
      // Predicated region
      $region17: #{_forward_impl.4} parent=11 // pred_check
        %p171 = pneg %p80
      $region18: #{_forward_impl.4} parent=11 // pred_check_branch
        %173 = sbr.rel (%p171) target = $region20
      $region19: #{_forward_impl.4} parent=11 // pred_region
        _
      $region20: #{_forward_impl.4} parent=11 // pred_fallthru
        _
      // Predicated region
      $region21: #{_forward_impl.4} parent=11 // pred_check
        %p174 = pneg %p101
      $region22: #{_forward_impl.4} parent=11 // pred_check_branch
        %176 = sbr.rel (%p174) target = $region24
      $region23: #{_forward_impl.4} parent=11 // pred_region
        _
      $region24: #{_forward_impl.4} parent=11 // pred_fallthru
        _
    $region12: #{_forward_impl.4} parent=5 // pred_fallthru
      _
    %p177 = scmp.lt.s32.totalorder %s12, 2
    // Predicated region
    $region25: #{_forward_impl.4} parent=5 // pred_check
      %p178 = pneg %p177
    $region26: #{_forward_impl.4} parent=5 // pred_check_branch
      %180 = sbr.rel (%p178) target = $region28
    $region27: #{_forward_impl.4} parent=5 // pred_region
      // Predicated region
      $region29: #{_forward_impl.4} parent=27 // pred_check
        %p181 = pneg %p32
      $region30: #{_forward_impl.4} parent=27 // pred_check_branch
        %183 = sbr.rel (%p181) target = $region32
      $region31: #{_forward_impl.4} parent=27 // pred_region
        %p184 = scmp.lt.s32.totalorder %s12, 1
        %s185 = scalar_select %p184, %s12, 1
        %s186 = smul.addr %s185, 2
        %s187 = smul.addr %s186, 4
        %s188 = scalar_lea.vmem %s0, %s187
      $region32: #{_forward_impl.4} parent=27 // pred_fallthru
        _
    $region28: #{_forward_impl.4} parent=5 // pred_fallthru
      _
    %p189 = scmp.le.s32.totalorder 1, %s12
    %p190 = scmp.lt.s32.totalorder %s12, 3
    %p191 = pnand %p189, %p190
    %p192 = pneg %p191
    // Predicated region
    $region33: #{_forward_impl.4} parent=5 // pred_check
      _
    $region34: #{_forward_impl.4} parent=5 // pred_check_branch
      %194 = sbr.rel (%p191) target = $region36
    $region35: #{_forward_impl.4} parent=5 // pred_region
      %s195 = ssub.s32 %s12, 1
      %p196 = scmp.lt.s32.totalorder %s17, 1
      %s197 = scalar_select %p196, %s17, 1
      %s198 = smul.addr %s197, 2
      %s199 = smul.addr %s198, 4
      %s200 = scalar_lea.vmem %s0, %s199
      %p201 = pneg %p38
      %p202 = pneg %p35
      %p203 = pneg %p59
      %p204 = pneg %p56
      %p205 = pneg %p80
      %p206 = pneg %p77
      %p207 = pneg %p101
      %p208 = pneg %p98
      %p209 = pneg %p127
      %p210 = pneg %p124
      %p211 = scmp.lt.s32.totalorder %s17, 1
      %s212 = scalar_select %p211, %s17, 1
      %s213 = smul.addr %s212, 2
      %s214 = smul.addr %s213, 4
      %s215 = scalar_lea.vmem %s4, %s214
      %p216 = pneg %p153
      %p217 = pneg %p150
      %p218 = scmp.lt.s32.totalorder %s17, 1
      %s219 = scalar_select %p218, %s17, 1
      %s220 = smul.addr %s219, 2
      %s221 = scalar_lea.vmem %s5, %s220
      %p222 = scmp.lt.s32.totalorder %s17, 1
      %s223 = scalar_select %p222, %s17, 1
      %s224 = smul.addr %s223, 2
      %s225 = smul.addr %s224, 4
      %s226 = scalar_lea.vmem %s0, %s225
      %p227 = scmp.lt.s32.totalorder %s17, 1
      %s228 = scalar_select %p227, %s17, 1
      %s229 = smul.addr %s228, 2
      %s230 = smul.addr %s229, 4
      %s231 = scalar_lea.vmem %s4, %s230
      %p232 = scmp.lt.s32.totalorder %s17, 1
      %s233 = scalar_select %p232, %s17, 1
      %s234 = smul.addr %s233, 2
      %s235 = scalar_lea.vmem %s5, %s234
      %v239 = vld [vmem:[%s226] sm:$0xf]
      %v240 = vld [vmem:[%s226 + $0x4] sm:$0xf]
      %v241 = vunpack.c.l.bf16 %v239
      %v242 = vunpack.c.l.bf16 %v240
      %v243 = vld [vmem:[%s1] sm:$0x1]
      %v245 = vlaneseq
      %v246 = vshrl.u32 %v245, 7
      %v247 = vsub.s32 0, %v246
      %v248 = vrot.slane %v243, %v247
      %v250 = vmul.f32 %v241, %v248
      %v251 = vmul.f32 %v242, %v248
      %v252 = vld [vmem:[%s2] sm:$0x1]
      %v254 = vlaneseq
      %v255 = vshrl.u32 %v254, 7
      %v256 = vsub.s32 0, %v255
      %v257 = vrot.slane %v252, %v256
      %v259 = vadd.f32 %v250, %v257
      %v260 = vadd.f32 %v251, %v257
      %v261 = vmax.f32 %v259, 0.0
      %v262 = vmax.f32 %v260, 0.0
      %v263 = vpack.c.bf16 %v262, %v261
      %v264 = vlaneseq
      %v265 = vshrl.u32 %v264, 7
      %v266 = vadd.s32 %v265, 8
      %vm267 = vcmp.lt.s32.totalorder %v265, 0
      %v268 = vsub.s32 0, %v265
      %v269 = vsel %vm267, %v268, %v265
      %v270 = vshrl.u32 %v269, 2
      %v271 = vand.u32 %v269, 3
      %v272 = vsub.s32 0, %v271
      %v273 = vsel %vm267, %v272, %v271
      %vm274 = vcmp.lt.s32.totalorder %v266, 0
      %v275 = vsub.s32 0, %v266
      %v276 = vsel %vm274, %v275, %v266
      %v277 = vshrl.u32 %v276, 2
      %v278 = vand.u32 %v276, 3
      %v279 = vsub.s32 0, %v278
      %v280 = vsel %vm274, %v279, %v278
      %vm281 = vcmp.ne.s32.totalorder %v273, 0
      %vm282 = vcmp.ne.s32.totalorder %v280, 0
      %vm283 = vcmp.lt.s32.totalorder %v273, 0
      %vm284 = vcmp.lt.s32.totalorder %v280, 0
      %vm285 = vmand %vm283, %vm281
      %vm286 = vmand %vm284, %vm282
      %v287 = vadd.s32 %v273, 4
      %v288 = vadd.s32 %v280, 4
      %v289 = vsel %vm285, %v287, %v273
      %v290 = vsel %vm286, %v288, %v280
      %v292 = vshrl.u32 %v263, 16
      %v294 = vrot.slane %v292, 7
      %v295 = vshll.u32 %v263, 16
      %v297 = vor.u32 %v294, %v295
      %vm300 = vcmask 1040384
      %vm301 = vsmask.f32 256
      %vm302 = vmand %vm300, %vm301
      %v303 = vsel %vm302, 0, %v297
      %v304 = vsel %vm302, %v294, 0
      %vm305 = vcmp.gt.s32.totalorder %v289, 0
      %vm306 = vcmp.gt.s32.totalorder %v290, 0
      %v307 = vsel %vm305, 1, 0
      %v308 = vsel %vm306, 1, 0
      %vm309 = vcmp.eq.s32.totalorder %v307, 1
      %vm310 = vcmp.eq.s32.totalorder %v308, 1
      %vm311 = vmpackc.low %vm309, %vm309
      %vm312 = vmpackc.low %vm310, %vm310
      %v313 = vsel %vm311, 65537, 0
      %v314 = vsel %vm312, 65537, 0
      %v315 = vunpack.c.l.b16 %v313
      %v316 = vunpack.c.l.b16 %v314
      %v317 = vpack.c.b16 %v316, %v315
      %vm318 = vcmp.ne.s16.totalorder %v317, 0
      %v319 = vsel %vm318, %v303, 0
      %vm320 = vcmp.lt.s32.totalorder %v289, 3
      %vm321 = vcmp.lt.s32.totalorder %v290, 3
      %v322 = vsel %vm320, 1, 0
      %v323 = vsel %vm321, 1, 0
      %vm324 = vcmp.eq.s32.totalorder %v322, 1
      %vm325 = vcmp.eq.s32.totalorder %v323, 1
      %vm326 = vmpackc.low %vm324, %vm324
      %vm327 = vmpackc.low %vm325, %vm325
      %v328 = vsel %vm326, 65537, 0
      %v329 = vsel %vm327, 65537, 0
      %v330 = vunpack.c.l.b16 %v328
      %v331 = vunpack.c.l.b16 %v329
      %v332 = vpack.c.b16 %v331, %v330
      %v333 = vrot.slane %v332, 7
      %vm334 = vcmp.ne.s16.totalorder %v333, 0
      %v335 = vsel %vm334, %v303, 0
      %v336 = vsel %vm334, %v304, 0
      %337 = vst [vmem:[#allocation2] sm:$0x33] 0
      %338 = vst [vmem:[#allocation2 + $0x8] sm:$0x3] 0
      %339 = vst [vmem:[#allocation2 + $0x18] sm:$0xcc] 0
      %340 = vst [vmem:[#allocation2 + $0x20] sm:$0xc] 0
      %v342 = vunpack.c.l.b16 %v319
      %v343 = vunpack.c.h.b16 %v319
      %v344 = vpack.c.b16 %v342, %v342
      %v345 = vpack.c.b16 %v343, %v343
      %vm346 = vcmask 1041408
      %vm347 = vcmask 1045508
      %vm348 = vmor %vm346, %vm347
      %v349 = vrot.slane %v344, 6
      %v350 = vrot.slane %v349, 4
      %v351 = vrot.slane %v345, 6
      %v352 = vsel %vm348, %v350, %v351
      %v353 = vrot.slane %v351, 4
      %357 = vst [vmem:[#allocation2] sm:$0xc] %v349
      %358 = vst [vmem:[#allocation2 + $0xc] sm:$0xf] %v352
      %359 = vst [vmem:[#allocation2 + $0x18] sm:$0x3] %v353
      %v361 = vunpack.c.l.b16 %v263
      %v362 = vunpack.c.h.b16 %v263
      %v363 = vpack.c.b16 %v361, %v361
      %v364 = vpack.c.b16 %v362, %v362
      %v365 = vrot.slane %v363, 6
      %v366 = vrot.slane %v365, 4
      %v367 = vrot.slane %v364, 6
      %v368 = vsel %vm348, %v366, %v367
      %v369 = vrot.slane %v367, 4
      %373 = vst [vmem:[#allocation2 + $0x4] sm:$0xc] %v365
      %374 = vst [vmem:[#allocation2 + $0x10] sm:$0xf] %v368
      %375 = vst [vmem:[#allocation2 + $0x1c] sm:$0x3] %v369
      %v378 = vunpack.c.l.b16 %v335
      %v379 = vunpack.c.h.b16 %v335
      %v380 = vunpack.c.l.b16 %v336
      %v381 = vpack.c.b16 %v378, %v378
      %v382 = vpack.c.b16 %v379, %v379
      %v383 = vpack.c.b16 %v380, %v380
      %vm384 = vcmask 1044484
      %vm385 = vmor %vm300, %vm384
      %v386 = vrot.slane %v381, 7
      %v387 = vrot.slane %v386, 4
      %v388 = vrot.slane %v382, 7
      %v389 = vsel %vm385, %v387, %v388
      %v390 = vrot.slane %v388, 4
      %v391 = vrot.slane %v383, 7
      %v392 = vsel %vm385, %v390, %v391
      %396 = vst [vmem:[#allocation2 + $0x8] sm:$0xc] %v386
      %397 = vst [vmem:[#allocation2 + $0x14] sm:$0xf] %v389
      %398 = vst [vmem:[#allocation2 + $0x20] sm:$0x3] %v392
      %v399 = vld [vmem:[#allocation2] sm:$0xff]
      %v400 = vld [vmem:[#allocation2 + $0x8] sm:$0xf]
      %v401 = vld [vmem:[#allocation2 + $0xc] sm:$0xff]
      %v402 = vld [vmem:[#allocation2 + $0x14] sm:$0xf]
      %v403 = vld [vmem:[%s3] sm:$0xf]
      %v404 = vld [vmem:[%s3 + $0x4] sm:$0xf]
      %v405 = vld [vmem:[%s3 + $0x8] sm:$0xf]
      %v406 = vld [vmem:[%s3 + $0xc] sm:$0xf]
      %v407 = vld [vmem:[%s3 + $0x10] sm:$0xf]
      %v408 = vld [vmem:[%s3 + $0x14] sm:$0xf]
      %v409 = vld [vmem:[%s3 + $0x18] sm:$0xf]
      %v410 = vld [vmem:[%s3 + $0x1c] sm:$0xf]
      %v411 = vld [vmem:[%s3 + $0x20] sm:$0xf]
      %v412 = vld [vmem:[%s3 + $0x24] sm:$0xf]
      %v413 = vld [vmem:[%s3 + $0x28] sm:$0xf]
      %v414 = vld [vmem:[%s3 + $0x2c] sm:$0xf]
      %v415 = vld [vmem:[%s3 + $0x30] sm:$0xf]
      %v416 = vld [vmem:[%s3 + $0x34] sm:$0xf]
      %v417 = vld [vmem:[%s3 + $0x38] sm:$0xf]
      %v418 = vld [vmem:[%s3 + $0x3c] sm:$0xf]
      %v419 = vld [vmem:[%s3 + $0x40] sm:$0xf]
      %v420 = vld [vmem:[%s3 + $0x44] sm:$0xf]
      %v421 = vld [vmem:[%s3 + $0x48] sm:$0xf]
      %v422 = vld [vmem:[%s3 + $0x4c] sm:$0xf]
      %v423 = vld [vmem:[%s3 + $0x50] sm:$0xf]
      %v424 = vld [vmem:[%s3 + $0x54] sm:$0xf]
      %v425 = vld [vmem:[%s3 + $0x58] sm:$0xf]
      %v426 = vld [vmem:[%s3 + $0x5c] sm:$0xf]
      %v427 = vld [vmem:[%s3 + $0x60] sm:$0xf]
      %v428 = vld [vmem:[%s3 + $0x64] sm:$0xf]
      %v429 = vld [vmem:[%s3 + $0x68] sm:$0xf]
      %v430 = vld [vmem:[%s3 + $0x6c] sm:$0xf]
      %v431 = vld [vmem:[%s3 + $0x70] sm:$0xf]
      %v432 = vld [vmem:[%s3 + $0x74] sm:$0xf]
      %v433 = vld [vmem:[%s3 + $0x78] sm:$0xf]
      %v434 = vld [vmem:[%s3 + $0x7c] sm:$0xf]
      %v435 = vld [vmem:[%s3 + $0x80] sm:$0xf]
      %v436 = vld [vmem:[%s3 + $0x84] sm:$0xf]
      %v437 = vld [vmem:[%s3 + $0x88] sm:$0xf]
      %v438 = vld [vmem:[%s3 + $0x8c] sm:$0xf]
      %v439 = vld [vmem:[%s3 + $0x90] sm:$0xf]
      %v440 = vld [vmem:[%s3 + $0x94] sm:$0xf]
      %v441 = vld [vmem:[%s3 + $0x98] sm:$0xf]
      %v442 = vld [vmem:[%s3 + $0x9c] sm:$0xf]
      %v443 = vld [vmem:[%s3 + $0xa0] sm:$0xf]
      %v444 = vld [vmem:[%s3 + $0xa4] sm:$0xf]
      %v445 = vld [vmem:[%s3 + $0xa8] sm:$0xf]
      %v446 = vld [vmem:[%s3 + $0xac] sm:$0xf]
      %v447 = vld [vmem:[%s3 + $0xb0] sm:$0xf]
      %v448 = vld [vmem:[%s3 + $0xb4] sm:$0xf]
      %v449 = vld [vmem:[%s3 + $0xb8] sm:$0xf]
      %v450 = vld [vmem:[%s3 + $0xbc] sm:$0xf]
      %v451 = vld [vmem:[#allocation2] sm:$0xcc]
      %v452 = vld [vmem:[#allocation2 + $0x8] sm:$0xc]
      %v453 = vld [vmem:[#allocation2 + $0xc] sm:$0xff]
      %v454 = vld [vmem:[#allocation2 + $0x14] sm:$0xf]
      %v455 = vld [vmem:[#allocation2 + $0x18] sm:$0x33]
      %v456 = vld [vmem:[#allocation2 + $0x20] sm:$0x3]
      %s457 = scalar_lea.vmem %s3, 192
      %v458 = vld [vmem:[%s457] sm:$0xf]
      %v459 = vld [vmem:[%s457 + $0x4] sm:$0xf]
      %v460 = vld [vmem:[%s457 + $0x8] sm:$0xf]
      %v461 = vld [vmem:[%s457 + $0xc] sm:$0xf]
      %v462 = vld [vmem:[%s457 + $0x10] sm:$0xf]
      %v463 = vld [vmem:[%s457 + $0x14] sm:$0xf]
      %v464 = vld [vmem:[%s457 + $0x18] sm:$0xf]
      %v465 = vld [vmem:[%s457 + $0x1c] sm:$0xf]
      %v466 = vld [vmem:[%s457 + $0x20] sm:$0xf]
      %v467 = vld [vmem:[%s457 + $0x24] sm:$0xf]
      %v468 = vld [vmem:[%s457 + $0x28] sm:$0xf]
      %v469 = vld [vmem:[%s457 + $0x2c] sm:$0xf]
      %v470 = vld [vmem:[%s457 + $0x30] sm:$0xf]
      %v471 = vld [vmem:[%s457 + $0x34] sm:$0xf]
      %v472 = vld [vmem:[%s457 + $0x38] sm:$0xf]
      %v473 = vld [vmem:[%s457 + $0x3c] sm:$0xf]
      %v474 = vld [vmem:[%s457 + $0x40] sm:$0xf]
      %v475 = vld [vmem:[%s457 + $0x44] sm:$0xf]
      %v476 = vld [vmem:[%s457 + $0x48] sm:$0xf]
      %v477 = vld [vmem:[%s457 + $0x4c] sm:$0xf]
      %v478 = vld [vmem:[%s457 + $0x50] sm:$0xf]
      %v479 = vld [vmem:[%s457 + $0x54] sm:$0xf]
      %v480 = vld [vmem:[%s457 + $0x58] sm:$0xf]
      %v481 = vld [vmem:[%s457 + $0x5c] sm:$0xf]
      %v482 = vld [vmem:[%s457 + $0x60] sm:$0xf]
      %v483 = vld [vmem:[%s457 + $0x64] sm:$0xf]
      %v484 = vld [vmem:[%s457 + $0x68] sm:$0xf]
      %v485 = vld [vmem:[%s457 + $0x6c] sm:$0xf]
      %v486 = vld [vmem:[%s457 + $0x70] sm:$0xf]
      %v487 = vld [vmem:[%s457 + $0x74] sm:$0xf]
      %v488 = vld [vmem:[%s457 + $0x78] sm:$0xf]
      %v489 = vld [vmem:[%s457 + $0x7c] sm:$0xf]
      %v490 = vld [vmem:[%s457 + $0x80] sm:$0xf]
      %v491 = vld [vmem:[%s457 + $0x84] sm:$0xf]
      %v492 = vld [vmem:[%s457 + $0x88] sm:$0xf]
      %v493 = vld [vmem:[%s457 + $0x8c] sm:$0xf]
      %v494 = vld [vmem:[%s457 + $0x90] sm:$0xf]
      %v495 = vld [vmem:[%s457 + $0x94] sm:$0xf]
      %v496 = vld [vmem:[%s457 + $0x98] sm:$0xf]
      %v497 = vld [vmem:[%s457 + $0x9c] sm:$0xf]
      %v498 = vld [vmem:[%s457 + $0xa0] sm:$0xf]
      %v499 = vld [vmem:[%s457 + $0xa4] sm:$0xf]
      %v500 = vld [vmem:[%s457 + $0xa8] sm:$0xf]
      %v501 = vld [vmem:[%s457 + $0xac] sm:$0xf]
      %v502 = vld [vmem:[%s457 + $0xb0] sm:$0xf]
      %v503 = vld [vmem:[%s457 + $0xb4] sm:$0xf]
      %v504 = vld [vmem:[%s457 + $0xb8] sm:$0xf]
      %v505 = vld [vmem:[%s457 + $0xbc] sm:$0xf]
      %v512 = vunpack.c.l.b16 %v451
      %v513 = vunpack.c.h.b16 %v451
      %v514 = vunpack.c.l.b16 %v452
      %v515 = vunpack.c.l.b16 %v453
      %v516 = vunpack.c.h.b16 %v453
      %v517 = vunpack.c.l.b16 %v454
      %v518 = vunpack.c.l.b16 %v455
      %v519 = vunpack.c.h.b16 %v455
      %v520 = vunpack.c.l.b16 %v456
      %v521 = vpack.c.b16 %v515, %v512
      %v522 = vpack.c.b16 %v516, %v513
      %v523 = vpack.c.b16 %v517, %v514
      %v524 = vpack.c.b16 %v518, %v518
      %v525 = vpack.c.b16 %v519, %v519
      %v526 = vpack.c.b16 %v520, %v520
      %vm527 = vcmask 1045504
      %v528 = vrot.slane %v521, 2
      %v529 = vrot.slane %v524, 2
      %v530 = vsel %vm527, %v528, %v529
      %v531 = vrot.slane %v522, 2
      %v532 = vrot.slane %v525, 2
      %v533 = vsel %vm527, %v531, %v532
      %v534 = vrot.slane %v523, 2
      %v535 = vrot.slane %v526, 2
      %v536 = vsel %vm527, %v534, %v535
      %v588 = vunpack.c.l.b16 %v458
      %v589 = vunpack.c.l.b16 %v459
      %v590 = vunpack.c.l.b16 %v460
      %v591 = vunpack.c.l.b16 %v461
      %v592 = vunpack.c.l.b16 %v462
      %v593 = vunpack.c.l.b16 %v463
      %v594 = vunpack.c.l.b16 %v464
      %v595 = vunpack.c.l.b16 %v465
      %v596 = vunpack.c.l.b16 %v466
      %v597 = vunpack.c.l.b16 %v467
      %v598 = vunpack.c.l.b16 %v468
      %v599 = vunpack.c.l.b16 %v469
      %v600 = vunpack.c.l.b16 %v470
      %v601 = vunpack.c.l.b16 %v471
      %v602 = vunpack.c.l.b16 %v472
      %v603 = vunpack.c.l.b16 %v473
      %v604 = vunpack.c.l.b16 %v474
      %v605 = vunpack.c.l.b16 %v475
      %v606 = vunpack.c.l.b16 %v476
      %v607 = vunpack.c.l.b16 %v477
      %v608 = vunpack.c.l.b16 %v478
      %v609 = vunpack.c.l.b16 %v479
      %v610 = vunpack.c.l.b16 %v480
      %v611 = vunpack.c.l.b16 %v481
      %v612 = vunpack.c.l.b16 %v482
      %v613 = vunpack.c.l.b16 %v483
      %v614 = vunpack.c.l.b16 %v484
      %v615 = vunpack.c.l.b16 %v485
      %v616 = vunpack.c.l.b16 %v486
      %v617 = vunpack.c.l.b16 %v487
      %v618 = vunpack.c.l.b16 %v488
      %v619 = vunpack.c.l.b16 %v489
      %v620 = vunpack.c.l.b16 %v490
      %v621 = vunpack.c.l.b16 %v491
      %v622 = vunpack.c.l.b16 %v492
      %v623 = vunpack.c.l.b16 %v493
      %v624 = vunpack.c.l.b16 %v494
      %v625 = vunpack.c.l.b16 %v495
      %v626 = vunpack.c.l.b16 %v496
      %v627 = vunpack.c.l.b16 %v497
      %v628 = vunpack.c.l.b16 %v498
      %v629 = vunpack.c.l.b16 %v499
      %v630 = vunpack.c.l.b16 %v500
      %v631 = vunpack.c.l.b16 %v501
      %v632 = vunpack.c.l.b16 %v502
      %v633 = vunpack.c.l.b16 %v503
      %v634 = vunpack.c.l.b16 %v504
      %v635 = vunpack.c.l.b16 %v505
      %v636 = vpack.c.b16 %v589, %v588
      %v637 = vpack.c.b16 %v591, %v590
      %v638 = vpack.c.b16 %v593, %v592
      %v639 = vpack.c.b16 %v595, %v594
      %v640 = vpack.c.b16 %v597, %v596
      %v641 = vpack.c.b16 %v599, %v598
      %v642 = vpack.c.b16 %v601, %v600
      %v643 = vpack.c.b16 %v603, %v602
      %v644 = vpack.c.b16 %v605, %v604
      %v645 = vpack.c.b16 %v607, %v606
      %v646 = vpack.c.b16 %v609, %v608
      %v647 = vpack.c.b16 %v611, %v610
      %v648 = vpack.c.b16 %v613, %v612
      %v649 = vpack.c.b16 %v615, %v614
      %v650 = vpack.c.b16 %v617, %v616
      %v651 = vpack.c.b16 %v619, %v618
      %v652 = vpack.c.b16 %v621, %v620
      %v653 = vpack.c.b16 %v623, %v622
      %v654 = vpack.c.b16 %v625, %v624
      %v655 = vpack.c.b16 %v627, %v626
      %v656 = vpack.c.b16 %v629, %v628
      %v657 = vpack.c.b16 %v631, %v630
      %v658 = vpack.c.b16 %v633, %v632
      %v659 = vpack.c.b16 %v635, %v634
      %684 = vmatprep.subr.bf16.mxu0 0
      %685 = vmatpush1.bf16.msra.mxu0 %v643
      %686 = vmatprep.subr.bf16.mxu0 0
      %687 = vmatpush1.bf16.msra.mxu0 %v642
      %688 = vmatprep.subr.bf16.mxu0 0
      %689 = vmatpush1.bf16.msra.mxu0 %v641
      %690 = vmatprep.subr.bf16.mxu0 0
      %691 = vmatpush1.bf16.msra.mxu0 %v640
      %692 = vmatprep.subr.bf16.mxu0 0
      %693 = vmatpush1.bf16.msra.mxu0 %v639
      %694 = vmatprep.subr.bf16.mxu0 0
      %695 = vmatpush1.bf16.msra.mxu0 %v638
      %696 = vmatprep.subr.bf16.mxu0 0
      %697 = vmatpush1.bf16.msra.mxu0 %v637
      %698 = vmatprep.subr.bf16.mxu0 0
      %699 = vmatpush1.bf16.msra.mxu0 %v636
      %700 = vmatprep.subr.bf16.mxu0 0
      %701 = vmatpush2.bf16.msra.mxu0 %v651
      %702 = vmatprep.subr.bf16.mxu0 0
      %703 = vmatpush2.bf16.msra.mxu0 %v650
      %704 = vmatprep.subr.bf16.mxu0 0
      %705 = vmatpush2.bf16.msra.mxu0 %v649
      %706 = vmatprep.subr.bf16.mxu0 0
      %707 = vmatpush2.bf16.msra.mxu0 %v648
      %708 = vmatprep.subr.bf16.mxu0 0
      %709 = vmatpush2.bf16.msra.mxu0 %v647
      %710 = vmatprep.subr.bf16.mxu0 0
      %711 = vmatpush2.bf16.msra.mxu0 %v646
      %712 = vmatprep.subr.bf16.mxu0 0
      %713 = vmatpush2.bf16.msra.mxu0 %v645
      %714 = vmatprep.subr.bf16.mxu0 0
      %715 = vmatpush2.bf16.msra.mxu0 %v644
      %716 = vmatprep.mubr.bf16.mxu0 %v533
      %717 = vmatmul.mubr.bf16.gmra.mxu0 %v530
      %v718 = vpop.f32.mrf.mxu0
      %v719 = vadd.f32 0.0, %v718
      %v720 = vpop.f32.mrf.mxu0
      %v721 = vpop.f32.mrf.mxu0
      %v722 = vadd.f32 0.0, %v721
      %v723 = vpop.f32.mrf.mxu0
      %724 = vdwg.mxu0
      %725 = vmatprep.subr.bf16.mxu0 0
      %726 = vmatpush1.bf16.msra.mxu0 %v659
      %727 = vmatprep.subr.bf16.mxu0 0
      %728 = vmatpush1.bf16.msra.mxu0 %v658
      %729 = vmatprep.subr.bf16.mxu0 0
      %730 = vmatpush1.bf16.msra.mxu0 %v657
      %731 = vmatprep.subr.bf16.mxu0 0
      %732 = vmatpush1.bf16.msra.mxu0 %v656
      %733 = vmatprep.subr.bf16.mxu0 0
      %734 = vmatpush1.bf16.msra.mxu0 %v655
      %735 = vmatprep.subr.bf16.mxu0 0
      %736 = vmatpush1.bf16.msra.mxu0 %v654
      %737 = vmatprep.subr.bf16.mxu0 0
      %738 = vmatpush1.bf16.msra.mxu0 %v653
      %739 = vmatprep.subr.bf16.mxu0 0
      %740 = vmatpush1.bf16.msra.mxu0 %v652
      %741 = vmatprep.subr.bf16.mxu0 0
      %742 = vmatpush2.bf16.msra.mxu0 0
      %743 = vmatprep.subr.bf16.mxu0 0
      %744 = vmatpush2.bf16.msra.mxu0 0
      %745 = vmatprep.subr.bf16.mxu0 0
      %746 = vmatpush2.bf16.msra.mxu0 0
      %747 = vmatprep.subr.bf16.mxu0 0
      %748 = vmatpush2.bf16.msra.mxu0 0
      %749 = vmatprep.subr.bf16.mxu0 0
      %750 = vmatpush2.bf16.msra.mxu0 0
      %751 = vmatprep.subr.bf16.mxu0 0
      %752 = vmatpush2.bf16.msra.mxu0 0
      %753 = vmatprep.subr.bf16.mxu0 0
      %754 = vmatpush2.bf16.msra.mxu0 0
      %755 = vmatprep.subr.bf16.mxu0 0
      %756 = vmatpush2.bf16.msra.mxu0 0
      %757 = vmatprep.mubr.bf16.mxu0 0
      %758 = vmatmul.mubr.bf16.gmra.mxu0 %v536
      %v759 = vpop.f32.mrf.mxu0
      %v760 = vadd.f32 %v719, %v759
      %v761 = vpop.f32.mrf.mxu0
      %v762 = vpop.f32.mrf.mxu0
      %v763 = vadd.f32 %v722, %v762
      %v764 = vpop.f32.mrf.mxu0
      %765 = vdwg.mxu0
      %v770 = vunpack.c.l.b16 %v399
      %v771 = vunpack.c.h.b16 %v399
      %v772 = vunpack.c.l.b16 %v400
      %v773 = vunpack.c.l.b16 %v401
      %v774 = vunpack.c.h.b16 %v401
      %v775 = vunpack.c.l.b16 %v402
      %v776 = vpack.c.b16 %v773, %v770
      %v777 = vpack.c.b16 %v774, %v771
      %v778 = vpack.c.b16 %v775, %v772
      %v830 = vunpack.c.l.b16 %v403
      %v831 = vunpack.c.l.b16 %v404
      %v832 = vunpack.c.l.b16 %v405
      %v833 = vunpack.c.l.b16 %v406
      %v834 = vunpack.c.l.b16 %v407
      %v835 = vunpack.c.l.b16 %v408
      %v836 = vunpack.c.l.b16 %v409
      %v837 = vunpack.c.l.b16 %v410
      %v838 = vunpack.c.l.b16 %v411
      %v839 = vunpack.c.l.b16 %v412
      %v840 = vunpack.c.l.b16 %v413
      %v841 = vunpack.c.l.b16 %v414
      %v842 = vunpack.c.l.b16 %v415
      %v843 = vunpack.c.l.b16 %v416
      %v844 = vunpack.c.l.b16 %v417
      %v845 = vunpack.c.l.b16 %v418
      %v846 = vunpack.c.l.b16 %v419
      %v847 = vunpack.c.l.b16 %v420
      %v848 = vunpack.c.l.b16 %v421
      %v849 = vunpack.c.l.b16 %v422
      %v850 = vunpack.c.l.b16 %v423
      %v851 = vunpack.c.l.b16 %v424
      %v852 = vunpack.c.l.b16 %v425
      %v853 = vunpack.c.l.b16 %v426
      %v854 = vunpack.c.l.b16 %v427
      %v855 = vunpack.c.l.b16 %v428
      %v856 = vunpack.c.l.b16 %v429
      %v857 = vunpack.c.l.b16 %v430
      %v858 = vunpack.c.l.b16 %v431
      %v859 = vunpack.c.l.b16 %v432
      %v860 = vunpack.c.l.b16 %v433
      %v861 = vunpack.c.l.b16 %v434
      %v862 = vunpack.c.l.b16 %v435
      %v863 = vunpack.c.l.b16 %v436
      %v864 = vunpack.c.l.b16 %v437
      %v865 = vunpack.c.l.b16 %v438
      %v866 = vunpack.c.l.b16 %v439
      %v867 = vunpack.c.l.b16 %v440
      %v868 = vunpack.c.l.b16 %v441
      %v869 = vunpack.c.l.b16 %v442
      %v870 = vunpack.c.l.b16 %v443
      %v871 = vunpack.c.l.b16 %v444
      %v872 = vunpack.c.l.b16 %v445
      %v873 = vunpack.c.l.b16 %v446
      %v874 = vunpack.c.l.b16 %v447
      %v875 = vunpack.c.l.b16 %v448
      %v876 = vunpack.c.l.b16 %v449
      %v877 = vunpack.c.l.b16 %v450
      %v878 = vpack.c.b16 %v831, %v830
      %v879 = vpack.c.b16 %v833, %v832
      %v880 = vpack.c.b16 %v835, %v834
      %v881 = vpack.c.b16 %v837, %v836
      %v882 = vpack.c.b16 %v839, %v838
      %v883 = vpack.c.b16 %v841, %v840
      %v884 = vpack.c.b16 %v843, %v842
      %v885 = vpack.c.b16 %v845, %v844
      %v886 = vpack.c.b16 %v847, %v846
      %v887 = vpack.c.b16 %v849, %v848
      %v888 = vpack.c.b16 %v851, %v850
      %v889 = vpack.c.b16 %v853, %v852
      %v890 = vpack.c.b16 %v855, %v854
      %v891 = vpack.c.b16 %v857, %v856
      %v892 = vpack.c.b16 %v859, %v858
      %v893 = vpack.c.b16 %v861, %v860
      %v894 = vpack.c.b16 %v863, %v862
      %v895 = vpack.c.b16 %v865, %v864
      %v896 = vpack.c.b16 %v867, %v866
      %v897 = vpack.c.b16 %v869, %v868
      %v898 = vpack.c.b16 %v871, %v870
      %v899 = vpack.c.b16 %v873, %v872
      %v900 = vpack.c.b16 %v875, %v874
      %v901 = vpack.c.b16 %v877, %v876
      %926 = vmatprep.subr.bf16.mxu0 0
      %927 = vmatpush1.bf16.msra.mxu0 %v885
      %928 = vmatprep.subr.bf16.mxu0 0
      %929 = vmatpush1.bf16.msra.mxu0 %v884
      %930 = vmatprep.subr.bf16.mxu0 0
      %931 = vmatpush1.bf16.msra.mxu0 %v883
      %932 = vmatprep.subr.bf16.mxu0 0
      %933 = vmatpush1.bf16.msra.mxu0 %v882
      %934 = vmatprep.subr.bf16.mxu0 0
      %935 = vmatpush1.bf16.msra.mxu0 %v881
      %936 = vmatprep.subr.bf16.mxu0 0
      %937 = vmatpush1.bf16.msra.mxu0 %v880
      %938 = vmatprep.subr.bf16.mxu0 0
      %939 = vmatpush1.bf16.msra.mxu0 %v879
      %940 = vmatprep.subr.bf16.mxu0 0
      %941 = vmatpush1.bf16.msra.mxu0 %v878
      %942 = vmatprep.subr.bf16.mxu0 0
      %943 = vmatpush2.bf16.msra.mxu0 %v893
      %944 = vmatprep.subr.bf16.mxu0 0
      %945 = vmatpush2.bf16.msra.mxu0 %v892
      %946 = vmatprep.subr.bf16.mxu0 0
      %947 = vmatpush2.bf16.msra.mxu0 %v891
      %948 = vmatprep.subr.bf16.mxu0 0
      %949 = vmatpush2.bf16.msra.mxu0 %v890
      %950 = vmatprep.subr.bf16.mxu0 0
      %951 = vmatpush2.bf16.msra.mxu0 %v889
      %952 = vmatprep.subr.bf16.mxu0 0
      %953 = vmatpush2.bf16.msra.mxu0 %v888
      %954 = vmatprep.subr.bf16.mxu0 0
      %955 = vmatpush2.bf16.msra.mxu0 %v887
      %956 = vmatprep.subr.bf16.mxu0 0
      %957 = vmatpush2.bf16.msra.mxu0 %v886
      %958 = vmatprep.mubr.bf16.mxu0 %v777
      %959 = vmatmul.mubr.bf16.gmra.mxu0 %v776
      %v960 = vpop.f32.mrf.mxu0
      %v961 = vadd.f32 %v760, %v960
      %v962 = vpop.f32.mrf.mxu0
      %v963 = vpop.f32.mrf.mxu0
      %v964 = vadd.f32 %v763, %v963
      %v965 = vpop.f32.mrf.mxu0
      %966 = vdwg.mxu0
      %967 = vmatprep.subr.bf16.mxu0 0
      %968 = vmatpush1.bf16.msra.mxu0 %v901
      %969 = vmatprep.subr.bf16.mxu0 0
      %970 = vmatpush1.bf16.msra.mxu0 %v900
      %971 = vmatprep.subr.bf16.mxu0 0
      %972 = vmatpush1.bf16.msra.mxu0 %v899
      %973 = vmatprep.subr.bf16.mxu0 0
      %974 = vmatpush1.bf16.msra.mxu0 %v898
      %975 = vmatprep.subr.bf16.mxu0 0
      %976 = vmatpush1.bf16.msra.mxu0 %v897
      %977 = vmatprep.subr.bf16.mxu0 0
      %978 = vmatpush1.bf16.msra.mxu0 %v896
      %979 = vmatprep.subr.bf16.mxu0 0
      %980 = vmatpush1.bf16.msra.mxu0 %v895
      %981 = vmatprep.subr.bf16.mxu0 0
      %982 = vmatpush1.bf16.msra.mxu0 %v894
      %983 = vmatprep.subr.bf16.mxu0 0
      %984 = vmatpush2.bf16.msra.mxu0 0
      %985 = vmatprep.subr.bf16.mxu0 0
      %986 = vmatpush2.bf16.msra.mxu0 0
      %987 = vmatprep.subr.bf16.mxu0 0
      %988 = vmatpush2.bf16.msra.mxu0 0
      %989 = vmatprep.subr.bf16.mxu0 0
      %990 = vmatpush2.bf16.msra.mxu0 0
      %991 = vmatprep.subr.bf16.mxu0 0
      %992 = vmatpush2.bf16.msra.mxu0 0
      %993 = vmatprep.subr.bf16.mxu0 0
      %994 = vmatpush2.bf16.msra.mxu0 0
      %995 = vmatprep.subr.bf16.mxu0 0
      %996 = vmatpush2.bf16.msra.mxu0 0
      %997 = vmatprep.subr.bf16.mxu0 0
      %998 = vmatpush2.bf16.msra.mxu0 0
      %999 = vmatprep.mubr.bf16.mxu0 0
      %1000 = vmatmul.mubr.bf16.gmra.mxu0 %v778
      %v1001 = vpop.f32.mrf.mxu0
      %v1002 = vadd.f32 %v961, %v1001
      %v1003 = vpop.f32.mrf.mxu0
      %v1004 = vpop.f32.mrf.mxu0
      %v1005 = vadd.f32 %v964, %v1004
      %v1006 = vpop.f32.mrf.mxu0
      %1007 = vdwg.mxu0
      %v1008 = vld [vmem:[#allocation2 + $0x18] sm:$0xff]
      %v1009 = vld [vmem:[#allocation2 + $0x20] sm:$0xf]
      %s1010 = scalar_lea.vmem %s3, 384
      %v1011 = vld [vmem:[%s1010] sm:$0xf]
      %v1012 = vld [vmem:[%s1010 + $0x4] sm:$0xf]
      %v1013 = vld [vmem:[%s1010 + $0x8] sm:$0xf]
      %v1014 = vld [vmem:[%s1010 + $0xc] sm:$0xf]
      %v1015 = vld [vmem:[%s1010 + $0x10] sm:$0xf]
      %v1016 = vld [vmem:[%s1010 + $0x14] sm:$0xf]
      %v1017 = vld [vmem:[%s1010 + $0x18] sm:$0xf]
      %v1018 = vld [vmem:[%s1010 + $0x1c] sm:$0xf]
      %v1019 = vld [vmem:[%s1010 + $0x20] sm:$0xf]
      %v1020 = vld [vmem:[%s1010 + $0x24] sm:$0xf]
      %v1021 = vld [vmem:[%s1010 + $0x28] sm:$0xf]
      %v1022 = vld [vmem:[%s1010 + $0x2c] sm:$0xf]
      %v1023 = vld [vmem:[%s1010 + $0x30] sm:$0xf]
      %v1024 = vld [vmem:[%s1010 + $0x34] sm:$0xf]
      %v1025 = vld [vmem:[%s1010 + $0x38] sm:$0xf]
      %v1026 = vld [vmem:[%s1010 + $0x3c] sm:$0xf]
      %v1027 = vld [vmem:[%s1010 + $0x40] sm:$0xf]
      %v1028 = vld [vmem:[%s1010 + $0x44] sm:$0xf]
      %v1029 = vld [vmem:[%s1010 + $0x48] sm:$0xf]
      %v1030 = vld [vmem:[%s1010 + $0x4c] sm:$0xf]
      %v1031 = vld [vmem:[%s1010 + $0x50] sm:$0xf]
      %v1032 = vld [vmem:[%s1010 + $0x54] sm:$0xf]
      %v1033 = vld [vmem:[%s1010 + $0x58] sm:$0xf]
      %v1034 = vld [vmem:[%s1010 + $0x5c] sm:$0xf]
      %v1035 = vld [vmem:[%s1010 + $0x60] sm:$0xf]
      %v1036 = vld [vmem:[%s1010 + $0x64] sm:$0xf]
      %v1037 = vld [vmem:[%s1010 + $0x68] sm:$0xf]
      %v1038 = vld [vmem:[%s1010 + $0x6c] sm:$0xf]
      %v1039 = vld [vmem:[%s1010 + $0x70] sm:$0xf]
      %v1040 = vld [vmem:[%s1010 + $0x74] sm:$0xf]
      %v1041 = vld [vmem:[%s1010 + $0x78] sm:$0xf]
      %v1042 = vld [vmem:[%s1010 + $0x7c] sm:$0xf]
      %v1043 = vld [vmem:[%s1010 + $0x80] sm:$0xf]
      %v1044 = vld [vmem:[%s1010 + $0x84] sm:$0xf]
      %v1045 = vld [vmem:[%s1010 + $0x88] sm:$0xf]
      %v1046 = vld [vmem:[%s1010 + $0x8c] sm:$0xf]
      %v1047 = vld [vmem:[%s1010 + $0x90] sm:$0xf]
      %v1048 = vld [vmem:[%s1010 + $0x94] sm:$0xf]
      %v1049 = vld [vmem:[%s1010 + $0x98] sm:$0xf]
      %v1050 = vld [vmem:[%s1010 + $0x9c] sm:$0xf]
      %v1051 = vld [vmem:[%s1010 + $0xa0] sm:$0xf]
      %v1052 = vld [vmem:[%s1010 + $0xa4] sm:$0xf]
      %v1053 = vld [vmem:[%s1010 + $0xa8] sm:$0xf]
      %v1054 = vld [vmem:[%s1010 + $0xac] sm:$0xf]
      %v1055 = vld [vmem:[%s1010 + $0xb0] sm:$0xf]
      %v1056 = vld [vmem:[%s1010 + $0xb4] sm:$0xf]
      %v1057 = vld [vmem:[%s1010 + $0xb8] sm:$0xf]
      %v1058 = vld [vmem:[%s1010 + $0xbc] sm:$0xf]
      %v1061 = vunpack.c.l.b16 %v1008
      %v1062 = vunpack.c.h.b16 %v1008
      %v1063 = vunpack.c.l.b16 %v1009
      %v1064 = vpack.c.b16 %v1061, %v515
      %v1065 = vpack.c.b16 %v1062, %v516
      %v1066 = vpack.c.b16 %v1063, %v517
      %v1118 = vunpack.c.l.b16 %v1011
      %v1119 = vunpack.c.l.b16 %v1012
      %v1120 = vunpack.c.l.b16 %v1013
      %v1121 = vunpack.c.l.b16 %v1014
      %v1122 = vunpack.c.l.b16 %v1015
      %v1123 = vunpack.c.l.b16 %v1016
      %v1124 = vunpack.c.l.b16 %v1017
      %v1125 = vunpack.c.l.b16 %v1018
      %v1126 = vunpack.c.l.b16 %v1019
      %v1127 = vunpack.c.l.b16 %v1020
      %v1128 = vunpack.c.l.b16 %v1021
      %v1129 = vunpack.c.l.b16 %v1022
      %v1130 = vunpack.c.l.b16 %v1023
      %v1131 = vunpack.c.l.b16 %v1024
      %v1132 = vunpack.c.l.b16 %v1025
      %v1133 = vunpack.c.l.b16 %v1026
      %v1134 = vunpack.c.l.b16 %v1027
      %v1135 = vunpack.c.l.b16 %v1028
      %v1136 = vunpack.c.l.b16 %v1029
      %v1137 = vunpack.c.l.b16 %v1030
      %v1138 = vunpack.c.l.b16 %v1031
      %v1139 = vunpack.c.l.b16 %v1032
      %v1140 = vunpack.c.l.b16 %v1033
      %v1141 = vunpack.c.l.b16 %v1034
      %v1142 = vunpack.c.l.b16 %v1035
      %v1143 = vunpack.c.l.b16 %v1036
      %v1144 = vunpack.c.l.b16 %v1037
      %v1145 = vunpack.c.l.b16 %v1038
      %v1146 = vunpack.c.l.b16 %v1039
      %v1147 = vunpack.c.l.b16 %v1040
      %v1148 = vunpack.c.l.b16 %v1041
      %v1149 = vunpack.c.l.b16 %v1042
      %v1150 = vunpack.c.l.b16 %v1043
      %v1151 = vunpack.c.l.b16 %v1044
      %v1152 = vunpack.c.l.b16 %v1045
      %v1153 = vunpack.c.l.b16 %v1046
      %v1154 = vunpack.c.l.b16 %v1047
      %v1155 = vunpack.c.l.b16 %v1048
      %v1156 = vunpack.c.l.b16 %v1049
      %v1157 = vunpack.c.l.b16 %v1050
      %v1158 = vunpack.c.l.b16 %v1051
      %v1159 = vunpack.c.l.b16 %v1052
      %v1160 = vunpack.c.l.b16 %v1053
      %v1161 = vunpack.c.l.b16 %v1054
      %v1162 = vunpack.c.l.b16 %v1055
      %v1163 = vunpack.c.l.b16 %v1056
      %v1164 = vunpack.c.l.b16 %v1057
      %v1165 = vunpack.c.l.b16 %v1058
      %v1166 = vpack.c.b16 %v1119, %v1118
      %v1167 = vpack.c.b16 %v1121, %v1120
      %v1168 = vpack.c.b16 %v1123, %v1122
      %v1169 = vpack.c.b16 %v1125, %v1124
      %v1170 = vpack.c.b16 %v1127, %v1126
      %v1171 = vpack.c.b16 %v1129, %v1128
      %v1172 = vpack.c.b16 %v1131, %v1130
      %v1173 = vpack.c.b16 %v1133, %v1132
      %v1174 = vpack.c.b16 %v1135, %v1134
      %v1175 = vpack.c.b16 %v1137, %v1136
      %v1176 = vpack.c.b16 %v1139, %v1138
      %v1177 = vpack.c.b16 %v1141, %v1140
      %v1178 = vpack.c.b16 %v1143, %v1142
      %v1179 = vpack.c.b16 %v1145, %v1144
      %v1180 = vpack.c.b16 %v1147, %v1146
      %v1181 = vpack.c.b16 %v1149, %v1148
      %v1182 = vpack.c.b16 %v1151, %v1150
      %v1183 = vpack.c.b16 %v1153, %v1152
      %v1184 = vpack.c.b16 %v1155, %v1154
      %v1185 = vpack.c.b16 %v1157, %v1156
      %v1186 = vpack.c.b16 %v1159, %v1158
      %v1187 = vpack.c.b16 %v1161, %v1160
      %v1188 = vpack.c.b16 %v1163, %v1162
      %v1189 = vpack.c.b16 %v1165, %v1164
      %1214 = vmatprep.subr.bf16.mxu0 0
      %1215 = vmatpush1.bf16.msra.mxu0 %v1173
      %1216 = vmatprep.subr.bf16.mxu0 0
      %1217 = vmatpush1.bf16.msra.mxu0 %v1172
      %1218 = vmatprep.subr.bf16.mxu0 0
      %1219 = vmatpush1.bf16.msra.mxu0 %v1171
      %1220 = vmatprep.subr.bf16.mxu0 0
      %1221 = vmatpush1.bf16.msra.mxu0 %v1170
      %1222 = vmatprep.subr.bf16.mxu0 0
      %1223 = vmatpush1.bf16.msra.mxu0 %v1169
      %1224 = vmatprep.subr.bf16.mxu0 0
      %1225 = vmatpush1.bf16.msra.mxu0 %v1168
      %1226 = vmatprep.subr.bf16.mxu0 0
      %1227 = vmatpush1.bf16.msra.mxu0 %v1167
      %1228 = vmatprep.subr.bf16.mxu0 0
      %1229 = vmatpush1.bf16.msra.mxu0 %v1166
      %1230 = vmatprep.subr.bf16.mxu0 0
      %1231 = vmatpush2.bf16.msra.mxu0 %v1181
      %1232 = vmatprep.subr.bf16.mxu0 0
      %1233 = vmatpush2.bf16.msra.mxu0 %v1180
      %1234 = vmatprep.subr.bf16.mxu0 0
      %1235 = vmatpush2.bf16.msra.mxu0 %v1179
      %1236 = vmatprep.subr.bf16.mxu0 0
      %1237 = vmatpush2.bf16.msra.mxu0 %v1178
      %1238 = vmatprep.subr.bf16.mxu0 0
      %1239 = vmatpush2.bf16.msra.mxu0 %v1177
      %1240 = vmatprep.subr.bf16.mxu0 0
      %1241 = vmatpush2.bf16.msra.mxu0 %v1176
      %1242 = vmatprep.subr.bf16.mxu0 0
      %1243 = vmatpush2.bf16.msra.mxu0 %v1175
      %1244 = vmatprep.subr.bf16.mxu0 0
      %1245 = vmatpush2.bf16.msra.mxu0 %v1174
      %1246 = vmatprep.mubr.bf16.mxu0 %v1065
      %1247 = vmatmul.mubr.bf16.gmra.mxu0 %v1064
      %v1248 = vpop.f32.mrf.mxu0
      %v1249 = vadd.f32 0.0, %v1248
      %v1250 = vpop.f32.mrf.mxu0
      %v1251 = vpop.f32.mrf.mxu0
      %v1252 = vadd.f32 0.0, %v1251
      %v1253 = vpop.f32.mrf.mxu0
      %1254 = vdwg.mxu0
      %1255 = vmatprep.subr.bf16.mxu0 0
      %1256 = vmatpush1.bf16.msra.mxu0 %v1189
      %1257 = vmatprep.subr.bf16.mxu0 0
      %1258 = vmatpush1.bf16.msra.mxu0 %v1188
      %1259 = vmatprep.subr.bf16.mxu0 0
      %1260 = vmatpush1.bf16.msra.mxu0 %v1187
      %1261 = vmatprep.subr.bf16.mxu0 0
      %1262 = vmatpush1.bf16.msra.mxu0 %v1186
      %1263 = vmatprep.subr.bf16.mxu0 0
      %1264 = vmatpush1.bf16.msra.mxu0 %v1185
      %1265 = vmatprep.subr.bf16.mxu0 0
      %1266 = vmatpush1.bf16.msra.mxu0 %v1184
      %1267 = vmatprep.subr.bf16.mxu0 0
      %1268 = vmatpush1.bf16.msra.mxu0 %v1183
      %1269 = vmatprep.subr.bf16.mxu0 0
      %1270 = vmatpush1.bf16.msra.mxu0 %v1182
      %1271 = vmatprep.subr.bf16.mxu0 0
      %1272 = vmatpush2.bf16.msra.mxu0 0
      %1273 = vmatprep.subr.bf16.mxu0 0
      %1274 = vmatpush2.bf16.msra.mxu0 0
      %1275 = vmatprep.subr.bf16.mxu0 0
      %1276 = vmatpush2.bf16.msra.mxu0 0
      %1277 = vmatprep.subr.bf16.mxu0 0
      %1278 = vmatpush2.bf16.msra.mxu0 0
      %1279 = vmatprep.subr.bf16.mxu0 0
      %1280 = vmatpush2.bf16.msra.mxu0 0
      %1281 = vmatprep.subr.bf16.mxu0 0
      %1282 = vmatpush2.bf16.msra.mxu0 0
      %1283 = vmatprep.subr.bf16.mxu0 0
      %1284 = vmatpush2.bf16.msra.mxu0 0
      %1285 = vmatprep.subr.bf16.mxu0 0
      %1286 = vmatpush2.bf16.msra.mxu0 0
      %1287 = vmatprep.mubr.bf16.mxu0 0
      %1288 = vmatmul.mubr.bf16.gmra.mxu0 %v1066
      %v1289 = vpop.f32.mrf.mxu0
      %v1290 = vadd.f32 %v1249, %v1289
      %v1291 = vpop.f32.mrf.mxu0
      %v1292 = vpop.f32.mrf.mxu0
      %v1293 = vadd.f32 %v1252, %v1292
      %v1294 = vpop.f32.mrf.mxu0
      %1295 = vdwg.mxu0
      %v1296 = vadd.f32 %v1002, %v1290
      %v1297 = vadd.f32 %v1005, %v1293
      %v1298 = vadd.f32 %v1296, %v1297
      %v1299 = vrot.slane %v1298, 4
      %v1300 = vadd.f32 %v1298, %v1299
      %v1301 = vrot.slane %v1300, 2
      %v1302 = vadd.f32 %v1300, %v1301
      %v1303 = vrot.slane %v1302, 1
      %v1304 = vadd.f32 %v1302, %v1303
      %v1305 = vmul.f32 %v1304, 0.0625
      %v1306 = vsub.f32 %v1296, %v1305
      %v1307 = vsub.f32 %v1297, %v1305
      %v1308 = vmul.f32 %v1306, %v1306
      %v1309 = vmul.f32 %v1307, %v1307
      %v1310 = vadd.f32 %v1308, %v1309
      %v1311 = vrot.slane %v1310, 4
      %v1312 = vadd.f32 %v1310, %v1311
      %v1313 = vrot.slane %v1312, 2
      %v1314 = vadd.f32 %v1312, %v1313
      %v1315 = vrot.slane %v1314, 1
      %v1316 = vadd.f32 %v1314, %v1315
      %vm1317 = vcmask 1040384
      %v1318 = vsel %vm1317, %v1304, %v1316
      %1319 = vst [vmem:[%s235] sm:$0x3] %v1318
      %v1320 = vpack.c.bf16 %v1297, %v1296
      %v1322 = vunpack.c.l.b16 %v1320
      %v1323 = vunpack.c.h.b16 %v1320
      %v1324 = vpack.c.b16 %v1322, %v1322
      %v1325 = vpack.c.b16 %v1323, %v1323
      %1328 = vst [vmem:[%s231] sm:$0xf] %v1324
      %1329 = vst [vmem:[%s231 + $0x4] sm:$0xf] %v1325
      %p1330 = scmp.lt.s32.totalorder %s17, 1
      %s1331 = scalar_select %p1330, %s17, 1
      %s1332 = smul.addr %s1331, 2
      %s1333 = smul.addr %s1332, 4
      %s1334 = scalar_lea.vmem %s4, %s1333
      %p1335 = scmp.lt.s32.totalorder %s17, 1
      %s1336 = scalar_select %p1335, %s17, 1
      %s1337 = smul.addr %s1336, 2
      %s1338 = scalar_lea.vmem %s5, %s1337
      // Predicated region
      $region37: #{_forward_impl.4} parent=35 // pred_check
        %p1339 = pneg %p124
      $region38: #{_forward_impl.4} parent=35 // pred_check_branch
        %1341 = sbr.rel (%p1339) target = $region40
      $region39: #{_forward_impl.4} parent=35 // pred_region
        _
      $region40: #{_forward_impl.4} parent=35 // pred_fallthru
        _
      // Predicated region
      $region41: #{_forward_impl.4} parent=35 // pred_check
        %p1342 = pneg %p150
      $region42: #{_forward_impl.4} parent=35 // pred_check_branch
        %1344 = sbr.rel (%p1342) target = $region44
      $region43: #{_forward_impl.4} parent=35 // pred_region
        _
      $region44: #{_forward_impl.4} parent=35 // pred_fallthru
        _
    $region36: #{_forward_impl.4} parent=5 // pred_fallthru
      _
    %p1345 = scmp.le.s32.totalorder 2, %s12
    // Predicated region
    $region45: #{_forward_impl.4} parent=5 // pred_check
      %p1346 = pneg %p1345
    $region46: #{_forward_impl.4} parent=5 // pred_check_branch
      %1348 = sbr.rel (%p1346) target = $region48
    $region47: #{_forward_impl.4} parent=5 // pred_region
      %s1349 = ssub.s32 %s12, 2
      // Predicated region
      $region49: #{_forward_impl.4} parent=47 // pred_check
        %p1350 = pneg %p130
      $region50: #{_forward_impl.4} parent=47 // pred_check_branch
        %1352 = sbr.rel (%p1350) target = $region52
      $region51: #{_forward_impl.4} parent=47 // pred_region
        %p1353 = scmp.lt.s32.totalorder %s18, 1
        %s1354 = scalar_select %p1353, %s18, 1
        %s1355 = smul.addr %s1354, 2
        %s1356 = smul.addr %s1355, 4
        %s1357 = scalar_lea.vmem %s4, %s1356
      $region52: #{_forward_impl.4} parent=47 // pred_fallthru
        _
      // Predicated region
      $region53: #{_forward_impl.4} parent=47 // pred_check
        %p1358 = pneg %p156
      $region54: #{_forward_impl.4} parent=47 // pred_check_branch
        %1360 = sbr.rel (%p1358) target = $region56
      $region55: #{_forward_impl.4} parent=47 // pred_region
        %p1361 = scmp.lt.s32.totalorder %s18, 1
        %s1362 = scalar_select %p1361, %s18, 1
        %s1363 = smul.addr %s1362, 2
        %s1364 = scalar_lea.vmem %s5, %s1363
      $region56: #{_forward_impl.4} parent=47 // pred_fallthru
        _
    $region48: #{_forward_impl.4} parent=5 // pred_fallthru
      _
  $region6: #{_forward_impl.4} parent=0 // loop_footer
    %s16 = sadd.s32 1, %s12
  $region7: #{_forward_impl.4} parent=0 // loop_footer_branch
    %11 = sbr.rel target = $region3
  $region8: #{_forward_impl.4} parent=0 // loop_exit
    _

</llo_original>
